<compile_context>
chip_gen: v7x
topology: tpu7x:2x2x1
jax: 0.10.0
libtpu: 0.0.40
codegen_flags: <defaults>
</compile_context>

<pallas_src>
import functools

import jax
import jax.numpy as jnp
from jax.experimental import pallas as pl
from jax.experimental.pallas import tpu as pltpu

_LANE = 128
_SUBLANE = 8
_ROW_TILE_CAP = 256   # keeps 2 (double-buffer) x TN x N_pad x 2B comfortably in VMEM on v7x

# pl.Squeezed() where available; `None` is the long-standing equivalent sentinel.
_SQUEEZE = pl.Squeezed() if hasattr(pl, "Squeezed") else None


def _round_up(x, m):
    return (x + m - 1) // m * m


def _pick_row_tile(n_pad, cap=_ROW_TILE_CAP):
    """Largest multiple of 8 that divides n_pad and is <= cap."""
    best = _SUBLANE
    t = _SUBLANE
    while t <= min(cap, n_pad):
        if n_pad % t == 0:
            best = t
        t += _SUBLANE
    return best


# ----------------------------------------------------------------------------
# Pallas kernel 1: per-node-type nn.Linear   y = x @ W^T + b  (torch layout W)
# ----------------------------------------------------------------------------
def _linear_kernel(x_ref, w_ref, b_ref, o_ref):
    # Contract last axes of x (M, K) and w (N, K) in-kernel instead of
    # materializing w.T in the wrapper.
    y = jax.lax.dot_general(
        x_ref[...], w_ref[...], (((1,), (1,)), ((), ())),
        preferred_element_type=jnp.float32)
    o_ref[...] = (y + b_ref[...]).astype(o_ref.dtype)


def pallas_linear(x, w, b, *, out_dtype=jnp.float32):
    m, k = x.shape
    n = w.shape[0]
    m_pad = _round_up(m, _SUBLANE)
    row_tile = _pick_row_tile(m_pad)
    if m_pad != m:
        x = jnp.pad(x, ((0, m_pad - m), (0, 0)))
    out = pl.pallas_call(
        _linear_kernel,
        out_shape=jax.ShapeDtypeStruct((m_pad, n), out_dtype),
        grid=(m_pad // row_tile,),
        in_specs=[
            pl.BlockSpec((row_tile, k), lambda i: (i, 0)),
            pl.BlockSpec((n, k), lambda i: (0, 0)),
            pl.BlockSpec((1, n), lambda i: (0, 0)),
        ],
        out_specs=pl.BlockSpec((row_tile, n), lambda i: (i, 0)),
        compiler_params=pltpu.CompilerParams(dimension_semantics=("parallel",)),
    )(x, w, b.reshape(1, n))
    return out if m_pad == m else out[:m]


# ----------------------------------------------------------------------------
# Pallas kernel 2: fused RGCN layer (mean aggregation + root + bias)
#   out[tile] = x[tile] @ root + bias
#             + sum_r (dinv_r[tile] * (counts_r[tile, :] @ x)) @ W_r
# grid = (dst_tiles "parallel", relations "arbitrary"); output block keyed on
# the dst tile only -> resident f32 accumulator across the relation reduction.
# ----------------------------------------------------------------------------
def _rgcn_agg_kernel(a_ref, xs_ref, xt_ref, w_ref, dinv_ref, root_ref, b_ref,
                     o_ref):
    r = pl.program_id(1)

    @pl.when(r == 0)
    def _():
        # root/bias term initializes the resident accumulator (runs once per
        # dst tile; cold for r > 0).
        o_ref[...] = (
            jnp.dot(xt_ref[...], root_ref[...], preferred_element_type=jnp.float32)
            + b_ref[...]
        )

    # neighbor sum for relation r (bf16 MXU, f32 accumulate), then scatter-mean
    h = jnp.dot(a_ref[...], xs_ref[...], preferred_element_type=jnp.float32)
    h = h * dinv_ref[...]                      # (TN, Fin) * (TN, 1) row scaling
    o_ref[...] += jnp.dot(h.astype(jnp.bfloat16), w_ref[...],
                          preferred_element_type=jnp.float32)


def pallas_rgcn_aggregate(counts, x_bf16, w_stack, dinv, root, bias, row_tile):
    num_rel, n_pad, _ = counts.shape
    fin = x_bf16.shape[1]
    fout_pad = w_stack.shape[2]
    num_tiles = n_pad // row_tile
    return pl.pallas_call(
        _rgcn_agg_kernel,
        out_shape=jax.ShapeDtypeStruct((n_pad, fout_pad), jnp.float32),
        grid=(num_tiles, num_rel),
        in_specs=[
            pl.BlockSpec((_SQUEEZE, row_tile, n_pad), lambda i, r: (r, i, 0)),  # counts[r] rows
            pl.BlockSpec((n_pad, fin), lambda i, r: (0, 0)),                    # x (src side), VMEM-resident
            pl.BlockSpec((row_tile, fin), lambda i, r: (i, 0)),                 # x dst tile for root term
            pl.BlockSpec((_SQUEEZE, fin, fout_pad), lambda i, r: (r, 0, 0)),    # W_r (lane padded)
            pl.BlockSpec((_SQUEEZE, row_tile, 1), lambda i, r: (r, i, 0)),      # 1/deg_r tile
            pl.BlockSpec((fin, fout_pad), lambda i, r: (0, 0)),                 # root weight
            pl.BlockSpec((1, fout_pad), lambda i, r: (0, 0)),                   # bias row
        ],
        out_specs=pl.BlockSpec((row_tile, fout_pad), lambda i, r: (i, 0)),
        compiler_params=pltpu.CompilerParams(
            dimension_semantics=("parallel", "arbitrary")),
    )(counts, x_bf16, x_bf16, w_stack, dinv, root, bias)


# ----------------------------------------------------------------------------
# Plain-JAX glue
# ----------------------------------------------------------------------------
def build_relation_counts(edge_index, edge_type, n_pad, num_relations):
    """Unnormalized per-relation edge-count matrices (bf16, exact small ints)
    plus reciprocal in-degrees (f32).  Normalization is applied in-kernel."""
    src, dst = edge_index[0], edge_index[1]
    counts = jnp.zeros((num_relations, n_pad, n_pad), jnp.float32)
    counts = counts.at[edge_type, dst, src].add(1.0)
    deg = counts.sum(axis=2)                                  # (R, n_pad)
    dinv = (1.0 / jnp.maximum(deg, 1.0))[..., None]           # (R, n_pad, 1) f32
    return counts.astype(jnp.bfloat16), dinv


def make_rgcn_params(key, in_c, out_c, num_relations, num_bases):
    k1, k2, k3 = jax.random.split(key, 3)
    return dict(
        basis=jax.random.normal(k1, (num_bases, in_c, out_c), jnp.float32) * 0.1,
        comp=jax.random.normal(k2, (num_relations, num_bases), jnp.float32) * 0.1,
        root=jax.random.normal(k3, (in_c, out_c), jnp.float32) * 0.1,
        bias=jnp.zeros((out_c,), jnp.float32),
    )


def rgcn_conv(params, x_f32, counts, dinv, row_tile):
    """One RGCNConv layer (basis decomposition, scatter-mean, root + bias)."""
    fout = params["root"].shape[1]
    fout_pad = _round_up(fout, _LANE)
    pad_o = fout_pad - fout

    # basis decomposition (parameter setup): W_r = sum_b comp[r, b] * basis[b]
    w_rel = jnp.einsum("rb,bio->rio", params["comp"], params["basis"])
    w_stack = jnp.pad(w_rel, ((0, 0), (0, 0), (0, pad_o))).astype(jnp.bfloat16)
    root_pad = jnp.pad(params["root"], ((0, 0), (0, pad_o))).astype(jnp.bfloat16)
    bias_pad = jnp.pad(params["bias"], (0, pad_o)).astype(jnp.float32).reshape(1, fout_pad)

    x_bf16 = x_f32.astype(jnp.bfloat16)
    out = pallas_rgcn_aggregate(counts, x_bf16, w_stack, dinv,
                                root_pad, bias_pad, row_tile)
    return out[:, :fout]


def homo_feature_rgcn_forward(node_feats, lin_params, conv1_params, conv2_params,
                              edge_index, edge_type, num_relations):
    num_author = node_feats[0].shape[0]          # 'author' is the first node type

    # trans_dimensions: per-type nn.Linear (Pallas matmul, torch weight layout)
    projected = [
        pallas_linear(x_t, p["w"], p["b"])
        for x_t, p in zip(node_feats, lin_params)
    ]
    # to_homogeneous: concatenate node features in node-type order
    x = jnp.concatenate(projected, axis=0)
    n = x.shape[0]

    n_pad = _round_up(n, _SUBLANE)
    row_tile = _pick_row_tile(n_pad)             # dst-row tile (the "parallel" grid axis)
    if n_pad != n:
        x = jnp.pad(x, ((0, n_pad - n), (0, 0)))

    counts, dinv = build_relation_counts(edge_index, edge_type, n_pad, num_relations)

    x = rgcn_conv(conv1_params, x, counts, dinv, row_tile)   # conv1
    x = rgcn_conv(conv2_params, x, counts, dinv, row_tile)   # conv2
    return x[:num_author]


# ----------------------------------------------------------------------------
# Pure-JAX reference (for in-script correctness check of the bf16 kernels)
# ----------------------------------------------------------------------------
def reference_forward(node_feats, lin_params, conv1_params, conv2_params,
                      edge_index, edge_type, num_relations):
    projected = [x_t @ p["w"].T + p["b"] for x_t, p in zip(node_feats, lin_params)]
    x = jnp.concatenate(projected, axis=0)
    n = x.shape[0]
    src, dst = edge_index[0], edge_index[1]
    a = jnp.zeros((num_relations, n, n), jnp.float32).at[edge_type, dst, src].add(1.0)
    a = a / jnp.maximum(a.sum(axis=2, keepdims=True), 1.0)
    for params in (conv1_params, conv2_params):
        w_rel = jnp.einsum("rb,bio->rio", params["comp"], params["basis"])
        x = (jnp.einsum("rij,jf,rfo->io", a, x, w_rel)
             + x @ params["root"] + params["bias"])
    return x[:node_feats[0].shape[0]]


# ----------------------------------------------------------------------------
# Demo / smoke test
# ----------------------------------------------------------------------------
if __name__ == "__main__":
    key = jax.random.PRNGKey(0)

    # data_map
    node_types = ["author", "paper", "term"]
    init_sizes = [8, 16, 12]
    node_counts = [6, 10, 4]
    num_relations = 4
    num_bases = 30
    in_feats, h_feats, out_feats = 16, 32, 8

    keys = jax.random.split(key, 16)

    # per-type raw features
    node_feats = [
        jax.random.normal(keys[i], (cnt, d), jnp.float32)
        for i, (cnt, d) in enumerate(zip(node_counts, init_sizes))
    ]

    # per-type Linear params (nn.Linear(init_sizes[i], in_feats), torch layout)
    lin_params = []
    for i, d in enumerate(init_sizes):
        kw, kb = jax.random.split(keys[4 + i])
        lin_params.append(dict(
            w=jax.random.normal(kw, (in_feats, d), jnp.float32) * 0.1,
            b=jax.random.normal(kb, (in_feats,), jnp.float32) * 0.1,
        ))

    conv1_params = make_rgcn_params(keys[8], in_feats, h_feats, num_relations, num_bases)
    conv2_params = make_rgcn_params(keys[9], h_feats, out_feats, num_relations, num_bases)

    # homogeneous graph: random edges over all nodes, random relation types
    num_nodes_total = sum(node_counts)
    num_edges = 48
    src = jax.random.randint(keys[10], (num_edges,), 0, num_nodes_total, jnp.int32)
    dst = jax.random.randint(keys[11], (num_edges,), 0, num_nodes_total, jnp.int32)
    edge_index = jnp.stack([src, dst], axis=0)
    edge_type = jax.random.randint(keys[12], (num_edges,), 0, num_relations, jnp.int32)

    fwd = jax.jit(
        functools.partial(homo_feature_rgcn_forward, num_relations=num_relations))
    out = fwd(node_feats, lin_params, conv1_params, conv2_params, edge_index, edge_type)
    out = jax.block_until_ready(out)

    assert out.shape == (node_counts[0], out_feats), out.shape
    assert bool(jnp.all(jnp.isfinite(out)))

    ref = reference_forward(node_feats, lin_params, conv1_params, conv2_params,
                            edge_index, edge_type, num_relations)
    assert jnp.allclose(out, ref, rtol=5e-2, atol=3e-2), (
        "max abs err = %f" % float(jnp.max(jnp.abs(out - ref))))

    print("KERNEL_OK")
</pallas_src>

<mosaic_0001>
module attributes {stable_mosaic.version = 11 : i64} {
  func.func private @main(%arg0: i32) attributes {dimension_semantics = [#tpu.dimension_semantics<core_parallel>], iteration_bounds = array<i64: 2>, tpu.core_type = #tpu.core_type<sc_scalar_subcore>, window_params = []} {
    return
  }
}

module attributes {stable_mosaic.version = 11 : i64} {
  func.func private @main(%arg0: i32) attributes {dimension_semantics = [#tpu.dimension_semantics<core_parallel>], iteration_bounds = array<i64: 2>, tpu.core_type = #tpu.core_type<sc_scalar_subcore>, window_params = []} {
    return
  }
}

module attributes {stable_mosaic.version = 11 : i64} {
  func.func @_linear_kernel(%arg0: i32, %arg1: memref<8x12xf32, #tpu.memory_space<vmem>>, %arg2: memref<16x12xf32, #tpu.memory_space<vmem>>, %arg3: memref<1x16xf32, #tpu.memory_space<vmem>>, %arg4: memref<8x16xf32, #tpu.memory_space<vmem>>) attributes {dimension_semantics = [#tpu.dimension_semantics<parallel>], iteration_bounds = array<i64: 1>, scalar_prefetch = 0 : i64, scratch_operands = 0 : i64, tpu.core_type = #tpu.core_type<tc>, window_params = [{transform_indices = @transform_0, window_bounds = array<i64: 8, 12>}, {pipeline_mode = #tpu.pipeline_mode<synchronous>, transform_indices = @transform_1, window_bounds = array<i64: 16, 12>}, {pipeline_mode = #tpu.pipeline_mode<synchronous>, transform_indices = @transform_2, window_bounds = array<i64: 1, 16>}, {transform_indices = @transform_3, window_bounds = array<i64: 8, 16>}]} {
    %c0 = arith.constant 0 : index
    %c0_0 = arith.constant 0 : index
    %0 = vector.load %arg1[%c0, %c0_0] : memref<8x12xf32, #tpu.memory_space<vmem>>, vector<8x12xf32>
    %c0_1 = arith.constant 0 : index
    %c0_2 = arith.constant 0 : index
    %1 = vector.load %arg2[%c0_1, %c0_2] : memref<16x12xf32, #tpu.memory_space<vmem>>, vector<16x12xf32>
    %cst = arith.constant dense<0.000000e+00> : vector<8x16xf32>
    %2 = tpu.matmul %0, %1, %cst {dimension_numbers = #tpu.dot_dimension_numbers<[1], [1], [0], [0], [0, 0, 1, 0], [], []>} : vector<8x12xf32>, vector<16x12xf32>, vector<8x16xf32> -> vector<8x16xf32>
    %c0_3 = arith.constant 0 : index
    %c0_4 = arith.constant 0 : index
    %3 = vector.load %arg3[%c0_3, %c0_4] : memref<1x16xf32, #tpu.memory_space<vmem>>, vector<1x16xf32>
    %4 = vector.broadcast %3 : vector<1x16xf32> to vector<8x16xf32>
    %5 = arith.addf %2, %4 : vector<8x16xf32>
    %c0_5 = arith.constant 0 : index
    %c0_6 = arith.constant 0 : index
    %6 = vector.load %arg4[%c0_5, %c0_6] : memref<8x16xf32, #tpu.memory_space<vmem>>, vector<8x16xf32>
    tpu.vector_store %arg4[%c0_5, %c0_6], %5 {strides = array<i32>} : memref<8x16xf32, #tpu.memory_space<vmem>>, vector<8x16xf32>,
    return
  }
  func.func @transform_0(%arg0: i32) -> (i32, i32) {
    %c0_i32 = arith.constant 0 : i32
    %c0_i32_0 = arith.constant 0 : i32
    return %arg0, %c0_i32 : i32, i32
  }
  func.func @transform_1(%arg0: i32) -> (i32, i32) {
    %c0_i32 = arith.constant 0 : i32
    %c0_i32_0 = arith.constant 0 : i32
    %c0_i32_1 = arith.constant 0 : i32
    return %c0_i32, %c0_i32_0 : i32, i32
  }
  func.func @transform_2(%arg0: i32) -> (i32, i32) {
    %c0_i32 = arith.constant 0 : i32
    %c0_i32_0 = arith.constant 0 : i32
    %c0_i32_1 = arith.constant 0 : i32
    return %c0_i32, %c0_i32_0 : i32, i32
  }
  func.func @transform_3(%arg0: i32) -> (i32, i32) {
    %c0_i32 = arith.constant 0 : i32
    %c0_i32_0 = arith.constant 0 : i32
    return %arg0, %c0_i32 : i32, i32
  }
}

module attributes {stable_mosaic.version = 11 : i64} {
  func.func @_linear_kernel(%arg0: i32, %arg1: memref<16x16xf32, #tpu.memory_space<vmem>>, %arg2: memref<16x16xf32, #tpu.memory_space<vmem>>, %arg3: memref<1x16xf32, #tpu.memory_space<vmem>>, %arg4: memref<16x16xf32, #tpu.memory_space<vmem>>) attributes {dimension_semantics = [#tpu.dimension_semantics<parallel>], iteration_bounds = array<i64: 1>, scalar_prefetch = 0 : i64, scratch_operands = 0 : i64, tpu.core_type = #tpu.core_type<tc>, window_params = [{transform_indices = @transform_0, window_bounds = array<i64: 16, 16>}, {pipeline_mode = #tpu.pipeline_mode<synchronous>, transform_indices = @transform_1, window_bounds = array<i64: 16, 16>}, {pipeline_mode = #tpu.pipeline_mode<synchronous>, transform_indices = @transform_2, window_bounds = array<i64: 1, 16>}, {transform_indices = @transform_3, window_bounds = array<i64: 16, 16>}]} {
    %c0 = arith.constant 0 : index
    %c0_0 = arith.constant 0 : index
    %0 = vector.load %arg1[%c0, %c0_0] : memref<16x16xf32, #tpu.memory_space<vmem>>, vector<16x16xf32>
    %c0_1 = arith.constant 0 : index
    %c0_2 = arith.constant 0 : index
    %1 = vector.load %arg2[%c0_1, %c0_2] : memref<16x16xf32, #tpu.memory_space<vmem>>, vector<16x16xf32>
    %cst = arith.constant dense<0.000000e+00> : vector<16x16xf32>
    %2 = tpu.matmul %0, %1, %cst {dimension_numbers = #tpu.dot_dimension_numbers<[1], [1], [0], [0], [0, 0, 1, 0], [], []>} : vector<16x16xf32>, vector<16x16xf32>, vector<16x16xf32> -> vector<16x16xf32>
    %c0_3 = arith.constant 0 : index
    %c0_4 = arith.constant 0 : index
    %3 = vector.load %arg3[%c0_3, %c0_4] : memref<1x16xf32, #tpu.memory_space<vmem>>, vector<1x16xf32>
    %4 = vector.broadcast %3 : vector<1x16xf32> to vector<16x16xf32>
    %5 = arith.addf %2, %4 : vector<16x16xf32>
    %c0_5 = arith.constant 0 : index
    %c0_6 = arith.constant 0 : index
    %6 = vector.load %arg4[%c0_5, %c0_6] : memref<16x16xf32, #tpu.memory_space<vmem>>, vector<16x16xf32>
    tpu.vector_store %arg4[%c0_5, %c0_6], %5 {strides = array<i32>} : memref<16x16xf32, #tpu.memory_space<vmem>>, vector<16x16xf32>,
    return
  }
  func.func @transform_0(%arg0: i32) -> (i32, i32) {
    %c0_i32 = arith.constant 0 : i32
    %c0_i32_0 = arith.constant 0 : i32
    return %arg0, %c0_i32 : i32, i32
  }
  func.func @transform_1(%arg0: i32) -> (i32, i32) {
    %c0_i32 = arith.constant 0 : i32
    %c0_i32_0 = arith.constant 0 : i32
    %c0_i32_1 = arith.constant 0 : i32
    return %c0_i32, %c0_i32_0 : i32, i32
  }
  func.func @transform_2(%arg0: i32) -> (i32, i32) {
    %c0_i32 = arith.constant 0 : i32
    %c0_i32_0 = arith.constant 0 : i32
    %c0_i32_1 = arith.constant 0 : i32
    return %c0_i32, %c0_i32_0 : i32, i32
  }
  func.func @transform_3(%arg0: i32) -> (i32, i32) {
    %c0_i32 = arith.constant 0 : i32
    %c0_i32_0 = arith.constant 0 : i32
    return %arg0, %c0_i32 : i32, i32
  }
}

module attributes {stable_mosaic.version = 11 : i64} {
  func.func @_linear_kernel(%arg0: i32, %arg1: memref<8x8xf32, #tpu.memory_space<vmem>>, %arg2: memref<16x8xf32, #tpu.memory_space<vmem>>, %arg3: memref<1x16xf32, #tpu.memory_space<vmem>>, %arg4: memref<8x16xf32, #tpu.memory_space<vmem>>) attributes {dimension_semantics = [#tpu.dimension_semantics<parallel>], iteration_bounds = array<i64: 1>, scalar_prefetch = 0 : i64, scratch_operands = 0 : i64, tpu.core_type = #tpu.core_type<tc>, window_params = [{transform_indices = @transform_0, window_bounds = array<i64: 8, 8>}, {pipeline_mode = #tpu.pipeline_mode<synchronous>, transform_indices = @transform_1, window_bounds = array<i64: 16, 8>}, {pipeline_mode = #tpu.pipeline_mode<synchronous>, transform_indices = @transform_2, window_bounds = array<i64: 1, 16>}, {transform_indices = @transform_3, window_bounds = array<i64: 8, 16>}]} {
    %c0 = arith.constant 0 : index
    %c0_0 = arith.constant 0 : index
    %0 = vector.load %arg1[%c0, %c0_0] : memref<8x8xf32, #tpu.memory_space<vmem>>, vector<8x8xf32>
    %c0_1 = arith.constant 0 : index
    %c0_2 = arith.constant 0 : index
    %1 = vector.load %arg2[%c0_1, %c0_2] : memref<16x8xf32, #tpu.memory_space<vmem>>, vector<16x8xf32>
    %cst = arith.constant dense<0.000000e+00> : vector<8x16xf32>
    %2 = tpu.matmul %0, %1, %cst {dimension_numbers = #tpu.dot_dimension_numbers<[1], [1], [0], [0], [0, 0, 1, 0], [], []>} : vector<8x8xf32>, vector<16x8xf32>, vector<8x16xf32> -> vector<8x16xf32>
    %c0_3 = arith.constant 0 : index
    %c0_4 = arith.constant 0 : index
    %3 = vector.load %arg3[%c0_3, %c0_4] : memref<1x16xf32, #tpu.memory_space<vmem>>, vector<1x16xf32>
    %4 = vector.broadcast %3 : vector<1x16xf32> to vector<8x16xf32>
    %5 = arith.addf %2, %4 : vector<8x16xf32>
    %c0_5 = arith.constant 0 : index
    %c0_6 = arith.constant 0 : index
    %6 = vector.load %arg4[%c0_5, %c0_6] : memref<8x16xf32, #tpu.memory_space<vmem>>, vector<8x16xf32>
    tpu.vector_store %arg4[%c0_5, %c0_6], %5 {strides = array<i32>} : memref<8x16xf32, #tpu.memory_space<vmem>>, vector<8x16xf32>,
    return
  }
  func.func @transform_0(%arg0: i32) -> (i32, i32) {
    %c0_i32 = arith.constant 0 : i32
    %c0_i32_0 = arith.constant 0 : i32
    return %arg0, %c0_i32 : i32, i32
  }
  func.func @transform_1(%arg0: i32) -> (i32, i32) {
    %c0_i32 = arith.constant 0 : i32
    %c0_i32_0 = arith.constant 0 : i32
    %c0_i32_1 = arith.constant 0 : i32
    return %c0_i32, %c0_i32_0 : i32, i32
  }
  func.func @transform_2(%arg0: i32) -> (i32, i32) {
    %c0_i32 = arith.constant 0 : i32
    %c0_i32_0 = arith.constant 0 : i32
    %c0_i32_1 = arith.constant 0 : i32
    return %c0_i32, %c0_i32_0 : i32, i32
  }
  func.func @transform_3(%arg0: i32) -> (i32, i32) {
    %c0_i32 = arith.constant 0 : i32
    %c0_i32_0 = arith.constant 0 : i32
    return %arg0, %c0_i32 : i32, i32
  }
}

module attributes {stable_mosaic.version = 11 : i64} {
  func.func @_rgcn_agg_kernel(%arg0: i32, %arg1: i32, %arg2: memref<1x24x24xbf16, #tpu.memory_space<vmem>>, %arg3: memref<24x32xbf16, #tpu.memory_space<vmem>>, %arg4: memref<24x32xbf16, #tpu.memory_space<vmem>>, %arg5: memref<1x32x128xbf16, #tpu.memory_space<vmem>>, %arg6: memref<1x24x1xf32, #tpu.memory_space<vmem>>, %arg7: memref<32x128xbf16, #tpu.memory_space<vmem>>, %arg8: memref<1x128xf32, #tpu.memory_space<vmem>>, %arg9: memref<24x128xf32, #tpu.memory_space<vmem>>) attributes {dimension_semantics = [#tpu.dimension_semantics<parallel>, #tpu.dimension_semantics<arbitrary>], iteration_bounds = array<i64: 1, 4>, scalar_prefetch = 0 : i64, scratch_operands = 0 : i64, tpu.core_type = #tpu.core_type<tc>, window_params = [{transform_indices = @transform_0, window_bounds = array<i64: 1, 24, 24>}, {pipeline_mode = #tpu.pipeline_mode<synchronous>, transform_indices = @transform_1, window_bounds = array<i64: 24, 32>}, {transform_indices = @transform_2, window_bounds = array<i64: 24, 32>}, {transform_indices = @transform_3, window_bounds = array<i64: 1, 32, 128>}, {transform_indices = @transform_4, window_bounds = array<i64: 1, 24, 1>}, {pipeline_mode = #tpu.pipeline_mode<synchronous>, transform_indices = @transform_5, window_bounds = array<i64: 32, 128>}, {pipeline_mode = #tpu.pipeline_mode<synchronous>, transform_indices = @transform_6, window_bounds = array<i64: 1, 128>}, {transform_indices = @transform_7, window_bounds = array<i64: 24, 128>}]} {
    %c0_i32 = arith.constant 0 : i32
    %0 = arith.cmpi eq, %arg1, %c0_i32 : i32
    %1 = arith.extui %0 : i1 to i32
    %c0_i32_0 = arith.constant 0 : i32
    %2 = arith.cmpi ne, %1, %c0_i32_0 : i32
    scf.if %2 {
      %c0_16 = arith.constant 0 : index
      %c0_17 = arith.constant 0 : index
      %18 = vector.load %arg4[%c0_16, %c0_17] : memref<24x32xbf16, #tpu.memory_space<vmem>>, vector<24x32xbf16>
      %c0_18 = arith.constant 0 : index
      %c0_19 = arith.constant 0 : index
      %19 = vector.load %arg7[%c0_18, %c0_19] : memref<32x128xbf16, #tpu.memory_space<vmem>>, vector<32x128xbf16>
      %cst_20 = arith.constant dense<0.000000e+00> : vector<24x128xf32>
      %20 = tpu.matmul %18, %19, %cst_20 {dimension_numbers = #tpu.dot_dimension_numbers<[1], [0], [0], [1], [0, 0, 1, 1], [], []>} : vector<24x32xbf16>, vector<32x128xbf16>, vector<24x128xf32> -> vector<24x128xf32>
      %c0_21 = arith.constant 0 : index
      %c0_22 = arith.constant 0 : index
      %21 = vector.load %arg8[%c0_21, %c0_22] : memref<1x128xf32, #tpu.memory_space<vmem>>, vector<1x128xf32>
      %22 = vector.broadcast %21 : vector<1x128xf32> to vector<24x128xf32>
      %23 = arith.addf %20, %22 : vector<24x128xf32>
      %c0_23 = arith.constant 0 : index
      %c0_24 = arith.constant 0 : index
      %24 = vector.load %arg9[%c0_23, %c0_24] : memref<24x128xf32, #tpu.memory_space<vmem>>, vector<24x128xf32>
      tpu.vector_store %arg9[%c0_23, %c0_24], %23 {strides = array<i32>} : memref<24x128xf32, #tpu.memory_space<vmem>>, vector<24x128xf32>,
    } else {
    }
    %c0 = arith.constant 0 : index
    %c0_1 = arith.constant 0 : index
    %c0_2 = arith.constant 0 : index
    %3 = vector.load %arg2[%c0, %c0_1, %c0_2] : memref<1x24x24xbf16, #tpu.memory_space<vmem>>, vector<1x24x24xbf16>
    %4 = vector.shape_cast %3 : vector<1x24x24xbf16> to vector<24x24xbf16>
    %c0_3 = arith.constant 0 : index
    %c0_4 = arith.constant 0 : index
    %5 = vector.load %arg3[%c0_3, %c0_4] : memref<24x32xbf16, #tpu.memory_space<vmem>>, vector<24x32xbf16>
    %cst = arith.constant dense<0.000000e+00> : vector<24x32xf32>
    %6 = tpu.matmul %4, %5, %cst {dimension_numbers = #tpu.dot_dimension_numbers<[1], [0], [0], [1], [0, 0, 1, 1], [], []>} : vector<24x24xbf16>, vector<24x32xbf16>, vector<24x32xf32> -> vector<24x32xf32>
    %c0_5 = arith.constant 0 : index
    %c0_6 = arith.constant 0 : index
    %c0_7 = arith.constant 0 : index
    %7 = vector.load %arg6[%c0_5, %c0_6, %c0_7] : memref<1x24x1xf32, #tpu.memory_space<vmem>>, vector<1x24x1xf32>
    %8 = vector.shape_cast %7 : vector<1x24x1xf32> to vector<24x1xf32>
    %9 = vector.broadcast %8 : vector<24x1xf32> to vector<24x32xf32>
    %10 = arith.mulf %6, %9 : vector<24x32xf32>
    %c0_8 = arith.constant 0 : index
    %c0_9 = arith.constant 0 : index
    %11 = vector.load %arg9[%c0_8, %c0_9] : memref<24x128xf32, #tpu.memory_space<vmem>>, vector<24x128xf32>
    %12 = arith.truncf %10 : vector<24x32xf32> to vector<24x32xbf16>
    %c0_10 = arith.constant 0 : index
    %c0_11 = arith.constant 0 : index
    %c0_12 = arith.constant 0 : index
    %13 = vector.load %arg5[%c0_10, %c0_11, %c0_12] : memref<1x32x128xbf16, #tpu.memory_space<vmem>>, vector<1x32x128xbf16>
    %14 = vector.shape_cast %13 : vector<1x32x128xbf16> to vector<32x128xbf16>
    %cst_13 = arith.constant dense<0.000000e+00> : vector<24x128xf32>
    %15 = tpu.matmul %12, %14, %cst_13 {dimension_numbers = #tpu.dot_dimension_numbers<[1], [0], [0], [1], [0, 0, 1, 1], [], []>} : vector<24x32xbf16>, vector<32x128xbf16>, vector<24x128xf32> -> vector<24x128xf32>
    %16 = arith.addf %11, %15 : vector<24x128xf32>
    %c0_14 = arith.constant 0 : index
    %c0_15 = arith.constant 0 : index
    %17 = vector.load %arg9[%c0_14, %c0_15] : memref<24x128xf32, #tpu.memory_space<vmem>>, vector<24x128xf32>
    tpu.vector_store %arg9[%c0_14, %c0_15], %16 {strides = array<i32>} : memref<24x128xf32, #tpu.memory_space<vmem>>, vector<24x128xf32>,
    return
  }
  func.func @transform_0(%arg0: i32, %arg1: i32) -> (i32, i32, i32) {
    %c0_i32 = arith.constant 0 : i32
    %c0_i32_0 = arith.constant 0 : i32
    return %arg1, %arg0, %c0_i32 : i32, i32, i32
  }
  func.func @transform_1(%arg0: i32, %arg1: i32) -> (i32, i32) {
    %c0_i32 = arith.constant 0 : i32
    %c0_i32_0 = arith.constant 0 : i32
    %c0_i32_1 = arith.constant 0 : i32
    return %c0_i32, %c0_i32_0 : i32, i32
  }
  func.func @transform_2(%arg0: i32, %arg1: i32) -> (i32, i32) {
    %c0_i32 = arith.constant 0 : i32
    %c0_i32_0 = arith.constant 0 : i32
    return %arg0, %c0_i32 : i32, i32
  }
  func.func @transform_3(%arg0: i32, %arg1: i32) -> (i32, i32, i32) {
    %c0_i32 = arith.constant 0 : i32
    %c0_i32_0 = arith.constant 0 : i32
    %c0_i32_1 = arith.constant 0 : i32
    return %arg1, %c0_i32, %c0_i32_0 : i32, i32, i32
  }
  func.func @transform_4(%arg0: i32, %arg1: i32) -> (i32, i32, i32) {
    %c0_i32 = arith.constant 0 : i32
    %c0_i32_0 = arith.constant 0 : i32
    return %arg1, %arg0, %c0_i32 : i32, i32, i32
  }
  func.func @transform_5(%arg0: i32, %arg1: i32) -> (i32, i32) {
    %c0_i32 = arith.constant 0 : i32
    %c0_i32_0 = arith.constant 0 : i32
    %c0_i32_1 = arith.constant 0 : i32
    return %c0_i32, %c0_i32_0 : i32, i32
  }
  func.func @transform_6(%arg0: i32, %arg1: i32) -> (i32, i32) {
    %c0_i32 = arith.constant 0 : i32
    %c0_i32_0 = arith.constant 0 : i32
    %c0_i32_1 = arith.constant 0 : i32
    return %c0_i32, %c0_i32_0 : i32, i32
  }
  func.func @transform_7(%arg0: i32, %arg1: i32) -> (i32, i32) {
    %c0_i32 = arith.constant 0 : i32
    %c0_i32_0 = arith.constant 0 : i32
    return %arg0, %c0_i32 : i32, i32
  }
}

module attributes {stable_mosaic.version = 11 : i64} {
  func.func @_rgcn_agg_kernel(%arg0: i32, %arg1: i32, %arg2: memref<1x24x24xbf16, #tpu.memory_space<vmem>>, %arg3: memref<24x16xbf16, #tpu.memory_space<vmem>>, %arg4: memref<24x16xbf16, #tpu.memory_space<vmem>>, %arg5: memref<1x16x128xbf16, #tpu.memory_space<vmem>>, %arg6: memref<1x24x1xf32, #tpu.memory_space<vmem>>, %arg7: memref<16x128xbf16, #tpu.memory_space<vmem>>, %arg8: memref<1x128xf32, #tpu.memory_space<vmem>>, %arg9: memref<24x128xf32, #tpu.memory_space<vmem>>) attributes {dimension_semantics = [#tpu.dimension_semantics<parallel>, #tpu.dimension_semantics<arbitrary>], iteration_bounds = array<i64: 1, 4>, scalar_prefetch = 0 : i64, scratch_operands = 0 : i64, tpu.core_type = #tpu.core_type<tc>, window_params = [{transform_indices = @transform_0, window_bounds = array<i64: 1, 24, 24>}, {pipeline_mode = #tpu.pipeline_mode<synchronous>, transform_indices = @transform_1, window_bounds = array<i64: 24, 16>}, {transform_indices = @transform_2, window_bounds = array<i64: 24, 16>}, {transform_indices = @transform_3, window_bounds = array<i64: 1, 16, 128>}, {transform_indices = @transform_4, window_bounds = array<i64: 1, 24, 1>}, {pipeline_mode = #tpu.pipeline_mode<synchronous>, transform_indices = @transform_5, window_bounds = array<i64: 16, 128>}, {pipeline_mode = #tpu.pipeline_mode<synchronous>, transform_indices = @transform_6, window_bounds = array<i64: 1, 128>}, {transform_indices = @transform_7, window_bounds = array<i64: 24, 128>}]} {
    %c0_i32 = arith.constant 0 : i32
    %0 = arith.cmpi eq, %arg1, %c0_i32 : i32
    %1 = arith.extui %0 : i1 to i32
    %c0_i32_0 = arith.constant 0 : i32
    %2 = arith.cmpi ne, %1, %c0_i32_0 : i32
    scf.if %2 {
      %c0_16 = arith.constant 0 : index
      %c0_17 = arith.constant 0 : index
      %18 = vector.load %arg4[%c0_16, %c0_17] : memref<24x16xbf16, #tpu.memory_space<vmem>>, vector<24x16xbf16>
      %c0_18 = arith.constant 0 : index
      %c0_19 = arith.constant 0 : index
      %19 = vector.load %arg7[%c0_18, %c0_19] : memref<16x128xbf16, #tpu.memory_space<vmem>>, vector<16x128xbf16>
      %cst_20 = arith.constant dense<0.000000e+00> : vector<24x128xf32>
      %20 = tpu.matmul %18, %19, %cst_20 {dimension_numbers = #tpu.dot_dimension_numbers<[1], [0], [0], [1], [0, 0, 1, 1], [], []>} : vector<24x16xbf16>, vector<16x128xbf16>, vector<24x128xf32> -> vector<24x128xf32>
      %c0_21 = arith.constant 0 : index
      %c0_22 = arith.constant 0 : index
      %21 = vector.load %arg8[%c0_21, %c0_22] : memref<1x128xf32, #tpu.memory_space<vmem>>, vector<1x128xf32>
      %22 = vector.broadcast %21 : vector<1x128xf32> to vector<24x128xf32>
      %23 = arith.addf %20, %22 : vector<24x128xf32>
      %c0_23 = arith.constant 0 : index
      %c0_24 = arith.constant 0 : index
      %24 = vector.load %arg9[%c0_23, %c0_24] : memref<24x128xf32, #tpu.memory_space<vmem>>, vector<24x128xf32>
      tpu.vector_store %arg9[%c0_23, %c0_24], %23 {strides = array<i32>} : memref<24x128xf32, #tpu.memory_space<vmem>>, vector<24x128xf32>,
    } else {
    }
    %c0 = arith.constant 0 : index
    %c0_1 = arith.constant 0 : index
    %c0_2 = arith.constant 0 : index
    %3 = vector.load %arg2[%c0, %c0_1, %c0_2] : memref<1x24x24xbf16, #tpu.memory_space<vmem>>, vector<1x24x24xbf16>
    %4 = vector.shape_cast %3 : vector<1x24x24xbf16> to vector<24x24xbf16>
    %c0_3 = arith.constant 0 : index
    %c0_4 = arith.constant 0 : index
    %5 = vector.load %arg3[%c0_3, %c0_4] : memref<24x16xbf16, #tpu.memory_space<vmem>>, vector<24x16xbf16>
    %cst = arith.constant dense<0.000000e+00> : vector<24x16xf32>
    %6 = tpu.matmul %4, %5, %cst {dimension_numbers = #tpu.dot_dimension_numbers<[1], [0], [0], [1], [0, 0, 1, 1], [], []>} : vector<24x24xbf16>, vector<24x16xbf16>, vector<24x16xf32> -> vector<24x16xf32>
    %c0_5 = arith.constant 0 : index
    %c0_6 = arith.constant 0 : index
    %c0_7 = arith.constant 0 : index
    %7 = vector.load %arg6[%c0_5, %c0_6, %c0_7] : memref<1x24x1xf32, #tpu.memory_space<vmem>>, vector<1x24x1xf32>
    %8 = vector.shape_cast %7 : vector<1x24x1xf32> to vector<24x1xf32>
    %9 = vector.broadcast %8 : vector<24x1xf32> to vector<24x16xf32>
    %10 = arith.mulf %6, %9 : vector<24x16xf32>
    %c0_8 = arith.constant 0 : index
    %c0_9 = arith.constant 0 : index
    %11 = vector.load %arg9[%c0_8, %c0_9] : memref<24x128xf32, #tpu.memory_space<vmem>>, vector<24x128xf32>
    %12 = arith.truncf %10 : vector<24x16xf32> to vector<24x16xbf16>
    %c0_10 = arith.constant 0 : index
    %c0_11 = arith.constant 0 : index
    %c0_12 = arith.constant 0 : index
    %13 = vector.load %arg5[%c0_10, %c0_11, %c0_12] : memref<1x16x128xbf16, #tpu.memory_space<vmem>>, vector<1x16x128xbf16>
    %14 = vector.shape_cast %13 : vector<1x16x128xbf16> to vector<16x128xbf16>
    %cst_13 = arith.constant dense<0.000000e+00> : vector<24x128xf32>
    %15 = tpu.matmul %12, %14, %cst_13 {dimension_numbers = #tpu.dot_dimension_numbers<[1], [0], [0], [1], [0, 0, 1, 1], [], []>} : vector<24x16xbf16>, vector<16x128xbf16>, vector<24x128xf32> -> vector<24x128xf32>
    %16 = arith.addf %11, %15 : vector<24x128xf32>
    %c0_14 = arith.constant 0 : index
    %c0_15 = arith.constant 0 : index
    %17 = vector.load %arg9[%c0_14, %c0_15] : memref<24x128xf32, #tpu.memory_space<vmem>>, vector<24x128xf32>
    tpu.vector_store %arg9[%c0_14, %c0_15], %16 {strides = array<i32>} : memref<24x128xf32, #tpu.memory_space<vmem>>, vector<24x128xf32>,
    return
  }
  func.func @transform_0(%arg0: i32, %arg1: i32) -> (i32, i32, i32) {
    %c0_i32 = arith.constant 0 : i32
    %c0_i32_0 = arith.constant 0 : i32
    return %arg1, %arg0, %c0_i32 : i32, i32, i32
  }
  func.func @transform_1(%arg0: i32, %arg1: i32) -> (i32, i32) {
    %c0_i32 = arith.constant 0 : i32
    %c0_i32_0 = arith.constant 0 : i32
    %c0_i32_1 = arith.constant 0 : i32
    return %c0_i32, %c0_i32_0 : i32, i32
  }
  func.func @transform_2(%arg0: i32, %arg1: i32) -> (i32, i32) {
    %c0_i32 = arith.constant 0 : i32
    %c0_i32_0 = arith.constant 0 : i32
    return %arg0, %c0_i32 : i32, i32
  }
  func.func @transform_3(%arg0: i32, %arg1: i32) -> (i32, i32, i32) {
    %c0_i32 = arith.constant 0 : i32
    %c0_i32_0 = arith.constant 0 : i32
    %c0_i32_1 = arith.constant 0 : i32
    return %arg1, %c0_i32, %c0_i32_0 : i32, i32, i32
  }
  func.func @transform_4(%arg0: i32, %arg1: i32) -> (i32, i32, i32) {
    %c0_i32 = arith.constant 0 : i32
    %c0_i32_0 = arith.constant 0 : i32
    return %arg1, %arg0, %c0_i32 : i32, i32, i32
  }
  func.func @transform_5(%arg0: i32, %arg1: i32) -> (i32, i32) {
    %c0_i32 = arith.constant 0 : i32
    %c0_i32_0 = arith.constant 0 : i32
    %c0_i32_1 = arith.constant 0 : i32
    return %c0_i32, %c0_i32_0 : i32, i32
  }
  func.func @transform_6(%arg0: i32, %arg1: i32) -> (i32, i32) {
    %c0_i32 = arith.constant 0 : i32
    %c0_i32_0 = arith.constant 0 : i32
    %c0_i32_1 = arith.constant 0 : i32
    return %c0_i32, %c0_i32_0 : i32, i32
  }
  func.func @transform_7(%arg0: i32, %arg1: i32) -> (i32, i32) {
    %c0_i32 = arith.constant 0 : i32
    %c0_i32_0 = arith.constant 0 : i32
    return %arg0, %c0_i32 : i32, i32
  }
}

</mosaic_0001>

<llo_original>
// kernel: homo_feature_rgcn_forward.7
$region0: #{homo_feature_rgcn_forward.7}
  #allocation0 [shape = 'u32[]', space=smem, size = 0x4, offset = 0x4, fixed_abs, tag = 'smem constant byte address 0x4 - core index']
  #allocation1 [shape = 'u32[144,128]{1,0:T(1,128)}', space=vmem, size = 0x12000, scoped, tag = 'internal scratch']
  %s0 = inlined_call_operand.vmem [shape: f32[8,12], index: 0, kind: input, shape index: {}]
  %s1 = inlined_call_operand.vmem [shape: f32[16,12], index: 1, kind: input, shape index: {}]
  %s2 = inlined_call_operand.vmem [shape: f32[1,16], index: 2, kind: input, shape index: {}]
  %s3 = inlined_call_operand.vmem [shape: f32[8,16], index: 3, kind: output, shape index: {}]
  %s4 = sld [smem:[#allocation0]]
  $region22: #{homo_feature_rgcn_forward.7} parent=0
    _
  %s6 = ssub.s32 1, %s4
  %s7 = scalar_select 0, %s6, %s4
  // Predicated region
  $region2: #{homo_feature_rgcn_forward.7} parent=0 // pred_check
    _
  $region3: #{homo_feature_rgcn_forward.7} parent=0 // pred_check_branch
    %9 = sbr.rel (0) target = $region5
  $region4: #{homo_feature_rgcn_forward.7} parent=0 // pred_region
    _
  $region5: #{homo_feature_rgcn_forward.7} parent=0 // pred_fallthru
    _
  // Predicated region
  $region6: #{homo_feature_rgcn_forward.7} parent=0 // pred_check
    _
  $region7: #{homo_feature_rgcn_forward.7} parent=0 // pred_check_branch
    %11 = sbr.rel (0) target = $region9
  $region8: #{homo_feature_rgcn_forward.7} parent=0 // pred_region
    _
  $region9: #{homo_feature_rgcn_forward.7} parent=0 // pred_fallthru
    _
  // Predicated region
  $region10: #{homo_feature_rgcn_forward.7} parent=0 // pred_check
    _
  $region11: #{homo_feature_rgcn_forward.7} parent=0 // pred_check_branch
    %13 = sbr.rel (0) target = $region13
  $region12: #{homo_feature_rgcn_forward.7} parent=0 // pred_region
    _
  $region13: #{homo_feature_rgcn_forward.7} parent=0 // pred_fallthru
    _
  %v14 = vld [vmem:[%s0] sm:$0xff]
  %v15 = vld [vmem:[%s1] sm:$0xff]
  %v16 = vld [vmem:[%s1 + $0x8] sm:$0xff]
  %v17 = vld [vmem:[%s2] sm:$0x1]
  %v19 = vlaneseq
  %v20 = vshrl.u32 %v19, 7
  %v21 = vsub.s32 0, %v20
  %v22 = vrot.slane %v17, %v21
  %vm24 = vcmask 97280
  %v26 = vsel %vm24, %v14, 0
  %v29 = vsel %vm24, %v15, 0
  %v32 = vsel %vm24, %v16, 0
  %34 = vmatprep.subr.mxu0 0.0
  %35 = vmatpush1.xpose.msra.mxu0 %v29
  %36 = vmatprep.subr.mxu0 0.0
  %37 = vmatpush1.xpose.msra.mxu0 %v32
  %38 = vmatprep.subr.mxu0 0.0
  %39 = vmatpush1.xpose.msra.mxu0 0.0
  %40 = vmatprep.subr.mxu0 0.0
  %41 = vmatpush1.xpose.msra.mxu0 0.0
  %42 = vmatprep.subr.mxu0 0.0
  %43 = vmatpush1.xpose.msra.mxu0 0.0
  %44 = vmatprep.subr.mxu0 0.0
  %45 = vmatpush1.xpose.msra.mxu0 0.0
  %46 = vmatprep.subr.mxu0 0.0
  %47 = vmatpush1.xpose.msra.mxu0 0.0
  %48 = vmatprep.subr.mxu0 0.0
  %49 = vmatpush1.xpose.msra.mxu0 0.0
  %50 = vmatprep.subr.mxu0 0.0
  %51 = vmatpush1.xpose.msra.mxu0 0.0
  %52 = vmatprep.subr.mxu0 0.0
  %53 = vmatpush1.xpose.msra.mxu0 0.0
  %54 = vmatprep.subr.mxu0 0.0
  %55 = vmatpush1.xpose.msra.mxu0 0.0
  %56 = vmatprep.subr.mxu0 0.0
  %57 = vmatpush1.xpose.msra.mxu0 0.0
  %58 = vmatprep.subr.mxu0 0.0
  %59 = vmatpush1.xpose.msra.mxu0 0.0
  %60 = vmatprep.subr.mxu0 0.0
  %61 = vmatpush1.xpose.msra.mxu0 0.0
  %62 = vmatprep.subr.mxu0 0.0
  %63 = vmatpush1.xpose.msra.mxu0 0.0
  %64 = vmatprep.subr.mxu0 0.0
  %65 = vmatpush1.xpose.msra.mxu0 0.0
  %66 = vmatprep.subr.mxu0 0.0
  %67 = vmatpush1.xpose.msra.mxu0 0.0
  %68 = vmatprep.subr.mxu0 0.0
  %69 = vmatpush1.xpose.msra.mxu0 0.0
  %70 = vmatprep.subr.mxu0 0.0
  %71 = vmatpush1.xpose.msra.mxu0 0.0
  %72 = vmatprep.subr.mxu0 0.0
  %73 = vmatpush1.xpose.msra.mxu0 0.0
  %74 = vmatprep.subr.mxu0 0.0
  %75 = vmatpush1.xpose.msra.mxu0 0.0
  %76 = vmatprep.subr.mxu0 0.0
  %77 = vmatpush1.xpose.msra.mxu0 0.0
  %78 = vmatprep.subr.mxu0 0.0
  %79 = vmatpush1.xpose.msra.mxu0 0.0
  %80 = vmatprep.subr.mxu0 0.0
  %81 = vmatpush1.xpose.msra.mxu0 0.0
  %82 = vmatprep.subr.mxu0 0.0
  %83 = vmatpush1.xpose.msra.mxu0 0.0
  %84 = vmatprep.subr.mxu0 0.0
  %85 = vmatpush1.xpose.msra.mxu0 0.0
  %86 = vmatprep.subr.mxu0 0.0
  %87 = vmatpush1.xpose.msra.mxu0 0.0
  %88 = vmatprep.subr.mxu0 0.0
  %89 = vmatpush1.xpose.msra.mxu0 0.0
  %90 = vmatprep.subr.mxu0 0.0
  %91 = vmatpush1.xpose.msra.mxu0 0.0
  %92 = vmatprep.subr.mxu0 0.0
  %93 = vmatpush1.xpose.msra.mxu0 0.0
  %94 = vmatprep.subr.mxu0 0.0
  %95 = vmatpush1.xpose.msra.mxu0 0.0
  %96 = vmatprep.subr.mxu0 0.0
  %97 = vmatpush1.xpose.msra.mxu0 0.0
  %98 = vmatprep.mubr.f32.mxu0 0.0
  %99 = vmatmul.mubr.f32.gmra.mrb[0].mxu0 %v26
  %v100 = vpop.f32.mrb[0].mxu0
  %v101 = vadd.f32 %v22, %v100
  %v102 = vpop.f32.mrb[0].mxu0
  %103 = vdwg.mxu0
  %vm104 = vcmask 130048
  %105 = vst.msk [vmem:[%s3] sm:$0xff] %vm104, %v101
  // Predicated region
  $region14: #{homo_feature_rgcn_forward.7} parent=0 // pred_check
    _
  $region15: #{homo_feature_rgcn_forward.7} parent=0 // pred_check_branch
    %107 = sbr.rel (0) target = $region17
  $region16: #{homo_feature_rgcn_forward.7} parent=0 // pred_region
    _
  $region17: #{homo_feature_rgcn_forward.7} parent=0 // pred_fallthru
    _
  // Predicated region
  $region18: #{homo_feature_rgcn_forward.7} parent=0 // pred_check
    _
  $region19: #{homo_feature_rgcn_forward.7} parent=0 // pred_check_branch
    %109 = sbr.rel (0) target = $region21
  $region20: #{homo_feature_rgcn_forward.7} parent=0 // pred_region
    _
  $region21: #{homo_feature_rgcn_forward.7} parent=0 // pred_fallthru
    _

// kernel: homo_feature_rgcn_forward.6
$region0: #{homo_feature_rgcn_forward.6}
  #allocation0 [shape = 'u32[]', space=smem, size = 0x4, offset = 0x4, fixed_abs, tag = 'smem constant byte address 0x4 - core index']
  #allocation1 [shape = 'u32[144,128]{1,0:T(1,128)}', space=vmem, size = 0x12000, scoped, tag = 'internal scratch']
  %s0 = inlined_call_operand.vmem [shape: f32[16,16], index: 0, kind: input, shape index: {}]
  %s1 = inlined_call_operand.vmem [shape: f32[16,16], index: 1, kind: input, shape index: {}]
  %s2 = inlined_call_operand.vmem [shape: f32[1,16], index: 2, kind: input, shape index: {}]
  %s3 = inlined_call_operand.vmem [shape: f32[16,16], index: 3, kind: output, shape index: {}]
  %s4 = sld [smem:[#allocation0]]
  $region22: #{homo_feature_rgcn_forward.6} parent=0
    _
  %s6 = ssub.s32 1, %s4
  %s7 = scalar_select 0, %s6, %s4
  // Predicated region
  $region2: #{homo_feature_rgcn_forward.6} parent=0 // pred_check
    _
  $region3: #{homo_feature_rgcn_forward.6} parent=0 // pred_check_branch
    %9 = sbr.rel (0) target = $region5
  $region4: #{homo_feature_rgcn_forward.6} parent=0 // pred_region
    _
  $region5: #{homo_feature_rgcn_forward.6} parent=0 // pred_fallthru
    _
  // Predicated region
  $region6: #{homo_feature_rgcn_forward.6} parent=0 // pred_check
    _
  $region7: #{homo_feature_rgcn_forward.6} parent=0 // pred_check_branch
    %11 = sbr.rel (0) target = $region9
  $region8: #{homo_feature_rgcn_forward.6} parent=0 // pred_region
    _
  $region9: #{homo_feature_rgcn_forward.6} parent=0 // pred_fallthru
    _
  // Predicated region
  $region10: #{homo_feature_rgcn_forward.6} parent=0 // pred_check
    _
  $region11: #{homo_feature_rgcn_forward.6} parent=0 // pred_check_branch
    %13 = sbr.rel (0) target = $region13
  $region12: #{homo_feature_rgcn_forward.6} parent=0 // pred_region
    _
  $region13: #{homo_feature_rgcn_forward.6} parent=0 // pred_fallthru
    _
  %v14 = vld [vmem:[%s0] sm:$0xff]
  %v15 = vld [vmem:[%s0 + $0x8] sm:$0xff]
  %v16 = vld [vmem:[%s1] sm:$0xff]
  %v17 = vld [vmem:[%s1 + $0x8] sm:$0xff]
  %v18 = vld [vmem:[%s2] sm:$0x1]
  %v20 = vlaneseq
  %v21 = vshrl.u32 %v20, 7
  %v22 = vsub.s32 0, %v21
  %v23 = vrot.slane %v18, %v22
  %vm25 = vcmask 130048
  %v27 = vsel %vm25, %v14, 0
  %v30 = vsel %vm25, %v15, 0
  %v33 = vsel %vm25, %v16, 0
  %v36 = vsel %vm25, %v17, 0
  %38 = vmatprep.subr.mxu0 0.0
  %39 = vmatpush1.xpose.msra.mxu0 %v33
  %40 = vmatprep.subr.mxu0 0.0
  %41 = vmatpush1.xpose.msra.mxu0 %v36
  %42 = vmatprep.subr.mxu0 0.0
  %43 = vmatpush1.xpose.msra.mxu0 0.0
  %44 = vmatprep.subr.mxu0 0.0
  %45 = vmatpush1.xpose.msra.mxu0 0.0
  %46 = vmatprep.subr.mxu0 0.0
  %47 = vmatpush1.xpose.msra.mxu0 0.0
  %48 = vmatprep.subr.mxu0 0.0
  %49 = vmatpush1.xpose.msra.mxu0 0.0
  %50 = vmatprep.subr.mxu0 0.0
  %51 = vmatpush1.xpose.msra.mxu0 0.0
  %52 = vmatprep.subr.mxu0 0.0
  %53 = vmatpush1.xpose.msra.mxu0 0.0
  %54 = vmatprep.subr.mxu0 0.0
  %55 = vmatpush1.xpose.msra.mxu0 0.0
  %56 = vmatprep.subr.mxu0 0.0
  %57 = vmatpush1.xpose.msra.mxu0 0.0
  %58 = vmatprep.subr.mxu0 0.0
  %59 = vmatpush1.xpose.msra.mxu0 0.0
  %60 = vmatprep.subr.mxu0 0.0
  %61 = vmatpush1.xpose.msra.mxu0 0.0
  %62 = vmatprep.subr.mxu0 0.0
  %63 = vmatpush1.xpose.msra.mxu0 0.0
  %64 = vmatprep.subr.mxu0 0.0
  %65 = vmatpush1.xpose.msra.mxu0 0.0
  %66 = vmatprep.subr.mxu0 0.0
  %67 = vmatpush1.xpose.msra.mxu0 0.0
  %68 = vmatprep.subr.mxu0 0.0
  %69 = vmatpush1.xpose.msra.mxu0 0.0
  %70 = vmatprep.subr.mxu0 0.0
  %71 = vmatpush1.xpose.msra.mxu0 0.0
  %72 = vmatprep.subr.mxu0 0.0
  %73 = vmatpush1.xpose.msra.mxu0 0.0
  %74 = vmatprep.subr.mxu0 0.0
  %75 = vmatpush1.xpose.msra.mxu0 0.0
  %76 = vmatprep.subr.mxu0 0.0
  %77 = vmatpush1.xpose.msra.mxu0 0.0
  %78 = vmatprep.subr.mxu0 0.0
  %79 = vmatpush1.xpose.msra.mxu0 0.0
  %80 = vmatprep.subr.mxu0 0.0
  %81 = vmatpush1.xpose.msra.mxu0 0.0
  %82 = vmatprep.subr.mxu0 0.0
  %83 = vmatpush1.xpose.msra.mxu0 0.0
  %84 = vmatprep.subr.mxu0 0.0
  %85 = vmatpush1.xpose.msra.mxu0 0.0
  %86 = vmatprep.subr.mxu0 0.0
  %87 = vmatpush1.xpose.msra.mxu0 0.0
  %88 = vmatprep.subr.mxu0 0.0
  %89 = vmatpush1.xpose.msra.mxu0 0.0
  %90 = vmatprep.subr.mxu0 0.0
  %91 = vmatpush1.xpose.msra.mxu0 0.0
  %92 = vmatprep.subr.mxu0 0.0
  %93 = vmatpush1.xpose.msra.mxu0 0.0
  %94 = vmatprep.subr.mxu0 0.0
  %95 = vmatpush1.xpose.msra.mxu0 0.0
  %96 = vmatprep.subr.mxu0 0.0
  %97 = vmatpush1.xpose.msra.mxu0 0.0
  %98 = vmatprep.subr.mxu0 0.0
  %99 = vmatpush1.xpose.msra.mxu0 0.0
  %100 = vmatprep.subr.mxu0 0.0
  %101 = vmatpush1.xpose.msra.mxu0 0.0
  %102 = vmatprep.mubr.f32.mxu0 0.0
  %103 = vmatmul.mubr.f32.gmra.mrb[0].mxu0 %v27
  %v104 = vpop.f32.mrb[0].mxu0
  %v105 = vadd.f32 %v23, %v104
  %v106 = vpop.f32.mrb[0].mxu0
  %107 = vmatprep.mubr.f32.mxu0 0.0
  %108 = vmatmul.mubr.f32.gmra.mrb[0].mxu0 %v30
  %v109 = vpop.f32.mrb[0].mxu0
  %v110 = vadd.f32 %v23, %v109
  %v111 = vpop.f32.mrb[0].mxu0
  %112 = vdwg.mxu0
  %113 = vst.msk [vmem:[%s3] sm:$0xff] %vm25, %v105
  %114 = vst.msk [vmem:[%s3 + $0x8] sm:$0xff] %vm25, %v110
  // Predicated region
  $region14: #{homo_feature_rgcn_forward.6} parent=0 // pred_check
    _
  $region15: #{homo_feature_rgcn_forward.6} parent=0 // pred_check_branch
    %116 = sbr.rel (0) target = $region17
  $region16: #{homo_feature_rgcn_forward.6} parent=0 // pred_region
    _
  $region17: #{homo_feature_rgcn_forward.6} parent=0 // pred_fallthru
    _
  // Predicated region
  $region18: #{homo_feature_rgcn_forward.6} parent=0 // pred_check
    _
  $region19: #{homo_feature_rgcn_forward.6} parent=0 // pred_check_branch
    %118 = sbr.rel (0) target = $region21
  $region20: #{homo_feature_rgcn_forward.6} parent=0 // pred_region
    _
  $region21: #{homo_feature_rgcn_forward.6} parent=0 // pred_fallthru
    _

// kernel: homo_feature_rgcn_forward.5
$region0: #{homo_feature_rgcn_forward.5}
  #allocation0 [shape = 'u32[]', space=smem, size = 0x4, offset = 0x4, fixed_abs, tag = 'smem constant byte address 0x4 - core index']
  #allocation1 [shape = 'u32[144,128]{1,0:T(1,128)}', space=vmem, size = 0x12000, scoped, tag = 'internal scratch']
  %s0 = inlined_call_operand.vmem [shape: f32[8,8], index: 0, kind: input, shape index: {}]
  %s1 = inlined_call_operand.vmem [shape: f32[16,8], index: 1, kind: input, shape index: {}]
  %s2 = inlined_call_operand.vmem [shape: f32[1,16], index: 2, kind: input, shape index: {}]
  %s3 = inlined_call_operand.vmem [shape: f32[8,16], index: 3, kind: output, shape index: {}]
  %s4 = sld [smem:[#allocation0]]
  $region22: #{homo_feature_rgcn_forward.5} parent=0
    _
  %s6 = ssub.s32 1, %s4
  %s7 = scalar_select 0, %s6, %s4
  // Predicated region
  $region2: #{homo_feature_rgcn_forward.5} parent=0 // pred_check
    _
  $region3: #{homo_feature_rgcn_forward.5} parent=0 // pred_check_branch
    %9 = sbr.rel (0) target = $region5
  $region4: #{homo_feature_rgcn_forward.5} parent=0 // pred_region
    _
  $region5: #{homo_feature_rgcn_forward.5} parent=0 // pred_fallthru
    _
  // Predicated region
  $region6: #{homo_feature_rgcn_forward.5} parent=0 // pred_check
    _
  $region7: #{homo_feature_rgcn_forward.5} parent=0 // pred_check_branch
    %11 = sbr.rel (0) target = $region9
  $region8: #{homo_feature_rgcn_forward.5} parent=0 // pred_region
    _
  $region9: #{homo_feature_rgcn_forward.5} parent=0 // pred_fallthru
    _
  // Predicated region
  $region10: #{homo_feature_rgcn_forward.5} parent=0 // pred_check
    _
  $region11: #{homo_feature_rgcn_forward.5} parent=0 // pred_check_branch
    %13 = sbr.rel (0) target = $region13
  $region12: #{homo_feature_rgcn_forward.5} parent=0 // pred_region
    _
  $region13: #{homo_feature_rgcn_forward.5} parent=0 // pred_fallthru
    _
  %v14 = vld [vmem:[%s0] sm:$0xff]
  %v15 = vld [vmem:[%s1] sm:$0xff]
  %v16 = vld [vmem:[%s1 + $0x8] sm:$0xff]
  %v17 = vld [vmem:[%s2] sm:$0x1]
  %v19 = vlaneseq
  %v20 = vshrl.u32 %v19, 7
  %v21 = vsub.s32 0, %v20
  %v22 = vrot.slane %v17, %v21
  %vm24 = vcmask 64512
  %v26 = vsel %vm24, %v14, 0
  %v29 = vsel %vm24, %v15, 0
  %v32 = vsel %vm24, %v16, 0
  %34 = vmatprep.subr.mxu0 0.0
  %35 = vmatpush1.xpose.msra.mxu0 %v29
  %36 = vmatprep.subr.mxu0 0.0
  %37 = vmatpush1.xpose.msra.mxu0 %v32
  %38 = vmatprep.subr.mxu0 0.0
  %39 = vmatpush1.xpose.msra.mxu0 0.0
  %40 = vmatprep.subr.mxu0 0.0
  %41 = vmatpush1.xpose.msra.mxu0 0.0
  %42 = vmatprep.subr.mxu0 0.0
  %43 = vmatpush1.xpose.msra.mxu0 0.0
  %44 = vmatprep.subr.mxu0 0.0
  %45 = vmatpush1.xpose.msra.mxu0 0.0
  %46 = vmatprep.subr.mxu0 0.0
  %47 = vmatpush1.xpose.msra.mxu0 0.0
  %48 = vmatprep.subr.mxu0 0.0
  %49 = vmatpush1.xpose.msra.mxu0 0.0
  %50 = vmatprep.subr.mxu0 0.0
  %51 = vmatpush1.xpose.msra.mxu0 0.0
  %52 = vmatprep.subr.mxu0 0.0
  %53 = vmatpush1.xpose.msra.mxu0 0.0
  %54 = vmatprep.subr.mxu0 0.0
  %55 = vmatpush1.xpose.msra.mxu0 0.0
  %56 = vmatprep.subr.mxu0 0.0
  %57 = vmatpush1.xpose.msra.mxu0 0.0
  %58 = vmatprep.subr.mxu0 0.0
  %59 = vmatpush1.xpose.msra.mxu0 0.0
  %60 = vmatprep.subr.mxu0 0.0
  %61 = vmatpush1.xpose.msra.mxu0 0.0
  %62 = vmatprep.subr.mxu0 0.0
  %63 = vmatpush1.xpose.msra.mxu0 0.0
  %64 = vmatprep.subr.mxu0 0.0
  %65 = vmatpush1.xpose.msra.mxu0 0.0
  %66 = vmatprep.subr.mxu0 0.0
  %67 = vmatpush1.xpose.msra.mxu0 0.0
  %68 = vmatprep.subr.mxu0 0.0
  %69 = vmatpush1.xpose.msra.mxu0 0.0
  %70 = vmatprep.subr.mxu0 0.0
  %71 = vmatpush1.xpose.msra.mxu0 0.0
  %72 = vmatprep.subr.mxu0 0.0
  %73 = vmatpush1.xpose.msra.mxu0 0.0
  %74 = vmatprep.subr.mxu0 0.0
  %75 = vmatpush1.xpose.msra.mxu0 0.0
  %76 = vmatprep.subr.mxu0 0.0
  %77 = vmatpush1.xpose.msra.mxu0 0.0
  %78 = vmatprep.subr.mxu0 0.0
  %79 = vmatpush1.xpose.msra.mxu0 0.0
  %80 = vmatprep.subr.mxu0 0.0
  %81 = vmatpush1.xpose.msra.mxu0 0.0
  %82 = vmatprep.subr.mxu0 0.0
  %83 = vmatpush1.xpose.msra.mxu0 0.0
  %84 = vmatprep.subr.mxu0 0.0
  %85 = vmatpush1.xpose.msra.mxu0 0.0
  %86 = vmatprep.subr.mxu0 0.0
  %87 = vmatpush1.xpose.msra.mxu0 0.0
  %88 = vmatprep.subr.mxu0 0.0
  %89 = vmatpush1.xpose.msra.mxu0 0.0
  %90 = vmatprep.subr.mxu0 0.0
  %91 = vmatpush1.xpose.msra.mxu0 0.0
  %92 = vmatprep.subr.mxu0 0.0
  %93 = vmatpush1.xpose.msra.mxu0 0.0
  %94 = vmatprep.subr.mxu0 0.0
  %95 = vmatpush1.xpose.msra.mxu0 0.0
  %96 = vmatprep.subr.mxu0 0.0
  %97 = vmatpush1.xpose.msra.mxu0 0.0
  %98 = vmatprep.mubr.f32.mxu0 0.0
  %99 = vmatmul.mubr.f32.gmra.mrb[0].mxu0 %v26
  %v100 = vpop.f32.mrb[0].mxu0
  %v101 = vadd.f32 %v22, %v100
  %v102 = vpop.f32.mrb[0].mxu0
  %103 = vdwg.mxu0
  %vm104 = vcmask 130048
  %105 = vst.msk [vmem:[%s3] sm:$0xff] %vm104, %v101
  // Predicated region
  $region14: #{homo_feature_rgcn_forward.5} parent=0 // pred_check
    _
  $region15: #{homo_feature_rgcn_forward.5} parent=0 // pred_check_branch
    %107 = sbr.rel (0) target = $region17
  $region16: #{homo_feature_rgcn_forward.5} parent=0 // pred_region
    _
  $region17: #{homo_feature_rgcn_forward.5} parent=0 // pred_fallthru
    _
  // Predicated region
  $region18: #{homo_feature_rgcn_forward.5} parent=0 // pred_check
    _
  $region19: #{homo_feature_rgcn_forward.5} parent=0 // pred_check_branch
    %109 = sbr.rel (0) target = $region21
  $region20: #{homo_feature_rgcn_forward.5} parent=0 // pred_region
    _
  $region21: #{homo_feature_rgcn_forward.5} parent=0 // pred_fallthru
    _

// kernel: homo_feature_rgcn_forward.9
$region0: #{homo_feature_rgcn_forward.9}
  #allocation0 [shape = 'u32[]', space=smem, size = 0x4, offset = 0x4, fixed_abs, tag = 'smem constant byte address 0x4 - core index']
  #allocation1 [shape = 'u32[144,128]{1,0:T(1,128)}', space=vmem, size = 0x12000, scoped, tag = 'internal scratch']
  %s0 = inlined_call_operand.vmem [shape: bf16[4,24,24], index: 0, kind: input, shape index: {}]
  %s1 = inlined_call_operand.vmem [shape: bf16[24,32], index: 1, kind: input, shape index: {}, may-alias: {1,2}]
  %s2 = inlined_call_operand.vmem [shape: bf16[24,32], index: 2, kind: input, shape index: {}, may-alias: {1,2}]
  %s3 = inlined_call_operand.vmem [shape: bf16[4,32,128], index: 3, kind: input, shape index: {}]
  %s4 = inlined_call_operand.vmem [shape: f32[4,24,1], index: 4, kind: input, shape index: {}]
  %s5 = inlined_call_operand.vmem [shape: bf16[32,128], index: 5, kind: input, shape index: {}]
  %s6 = inlined_call_operand.vmem [shape: f32[1,128], index: 6, kind: input, shape index: {}]
  %s7 = inlined_call_operand.vmem [shape: f32[24,128], index: 7, kind: output, shape index: {}]
  %s8 = sld [smem:[#allocation0]]
  $region65: #{homo_feature_rgcn_forward.9} parent=0
    _
  %s10 = ssub.s32 1, %s8
  %s11 = scalar_select 0, %s10, %s8
  loop: start=0, step=1, limit=6
  $region2: #{homo_feature_rgcn_forward.9} parent=0 // loop_pre_header
    _
  $region3: #{homo_feature_rgcn_forward.9} parent=0 // loop_header
    %s13 = sphi 0, %s17
    %p14 = scmp.ge.s32.totalorder %s13, 6
    %s20 = sphi 0, %s32
    %s21 = sphi 0, %s28
    %s22 = sphi 0, %s20
    %s23 = sphi 0, %s21
    %s24 = sphi 0, %s22
    %s25 = sphi 0, %s23
    %s37 = sphi 0, %s39
    %s40 = sphi 0, %s37
    %s41 = sphi 0, %s40
    %s57 = sphi 0, %s41
    %s61 = sphi 0, %s61
    %s63 = sphi 0, %s61
    %s64 = sphi 0, %s63
    %s78 = sphi 0, %s64
    %s84 = sphi 0, %s86
    %s87 = sphi 0, %s84
    %s88 = sphi 0, %s87
    %s104 = sphi 0, %s88
    %s110 = sphi 0, %s112
    %s113 = sphi 0, %s110
    %s114 = sphi 0, %s113
    %s130 = sphi 0, %s114
    %s138 = sphi 0, %s140
    %s141 = sphi 0, %s138
    %s142 = sphi 0, %s141
    %s158 = sphi 0, %s142
    %s162 = sphi 0, %s162
    %s164 = sphi 0, %s162
    %s165 = sphi 0, %s164
    %s179 = sphi 0, %s165
    %s183 = sphi 0, %s183
    %s185 = sphi 0, %s183
    %s186 = sphi 0, %s185
    %s200 = sphi 0, %s186
    %s206 = sphi 0, %s208
    %s209 = sphi 0, %s206
    %s210 = sphi 0, %s209
    %s226 = sphi 0, %s210
  $region4: #{homo_feature_rgcn_forward.9} parent=0 // loop_header_branch
    %16 = sbr.rel (%p14) target = $region8
  $region5: #{homo_feature_rgcn_forward.9} parent=0 // loop_body
    %s18 = ssub.s32 %s13, 1
    %s19 = ssub.s32 %s13, 2
    %s26 = sadd.s32 1, %s21
    %p27 = scmp.ge.s32.totalorder %s26, 4
    %s28 = scalar_select %p27, 0, %s26
    %s29 = sadd.s32 1, %s20
    %s30 = scalar_select %p27, %s29, %s20
    %p31 = scmp.ge.s32.totalorder %s30, 1
    %s32 = scalar_select %p31, 0, %s30
    %s33 = ssub.s32 %s21, %s28
    %s34 = ssub.s32 %s20, %s32
    %s35 = sor.u32 %s33, %s34
    %p36 = scmp.eq.s32.totalorder %s35, 0
    %s38 = sadd.s32 %s37, 1
    %s39 = scalar_select %p36, %s37, %s38
    %p42 = pneg %p36
    %p43 = scmp.eq.s32.totalorder %s13, 3
    %p44 = por %p42, %p43
    %p45 = scmp.ne.s32.totalorder %s37, %s40
    %p46 = scmp.eq.s32.totalorder %s13, 0
    %p47 = por %p45, %p46
    %p48 = scmp.ne.s32.totalorder %s37, %s40
    %p49 = scmp.eq.s32.totalorder %s18, 3
    %p50 = por %p48, %p49
    %p51 = scmp.ne.s32.totalorder %s40, %s41
    %p52 = scmp.eq.s32.totalorder %s18, 0
    %p53 = por %p51, %p52
    %p54 = scmp.ne.s32.totalorder %s40, %s41
    %p55 = scmp.eq.s32.totalorder %s19, 3
    %p56 = por %p54, %p55
    %p58 = scmp.ne.s32.totalorder %s41, %s57
    %p59 = scmp.eq.s32.totalorder %s19, 0
    %p60 = por %p58, %p59
    %s62 = sadd.s32 %s61, 1
    %p65 = scmp.eq.s32.totalorder %s13, 3
    %p66 = scmp.ne.s32.totalorder %s61, %s63
    %p67 = scmp.eq.s32.totalorder %s13, 0
    %p68 = por %p66, %p67
    %p69 = scmp.ne.s32.totalorder %s61, %s63
    %p70 = scmp.eq.s32.totalorder %s18, 3
    %p71 = por %p69, %p70
    %p72 = scmp.ne.s32.totalorder %s63, %s64
    %p73 = scmp.eq.s32.totalorder %s18, 0
    %p74 = por %p72, %p73
    %p75 = scmp.ne.s32.totalorder %s63, %s64
    %p76 = scmp.eq.s32.totalorder %s19, 3
    %p77 = por %p75, %p76
    %p79 = scmp.ne.s32.totalorder %s64, %s78
    %p80 = scmp.eq.s32.totalorder %s19, 0
    %p81 = por %p79, %p80
    %s82 = ssub.s32 %s20, %s32
    %p83 = scmp.eq.s32.totalorder %s82, 0
    %s85 = sadd.s32 %s84, 1
    %s86 = scalar_select %p83, %s84, %s85
    %p89 = pneg %p83
    %p90 = scmp.eq.s32.totalorder %s13, 3
    %p91 = por %p89, %p90
    %p92 = scmp.ne.s32.totalorder %s84, %s87
    %p93 = scmp.eq.s32.totalorder %s13, 0
    %p94 = por %p92, %p93
    %p95 = scmp.ne.s32.totalorder %s84, %s87
    %p96 = scmp.eq.s32.totalorder %s18, 3
    %p97 = por %p95, %p96
    %p98 = scmp.ne.s32.totalorder %s87, %s88
    %p99 = scmp.eq.s32.totalorder %s18, 0
    %p100 = por %p98, %p99
    %p101 = scmp.ne.s32.totalorder %s87, %s88
    %p102 = scmp.eq.s32.totalorder %s19, 3
    %p103 = por %p101, %p102
    %p105 = scmp.ne.s32.totalorder %s88, %s104
    %p106 = scmp.eq.s32.totalorder %s19, 0
    %p107 = por %p105, %p106
    %s108 = ssub.s32 %s21, %s28
    %p109 = scmp.eq.s32.totalorder %s108, 0
    %s111 = sadd.s32 %s110, 1
    %s112 = scalar_select %p109, %s110, %s111
    %p115 = pneg %p109
    %p116 = scmp.eq.s32.totalorder %s13, 3
    %p117 = por %p115, %p116
    %p118 = scmp.ne.s32.totalorder %s110, %s113
    %p119 = scmp.eq.s32.totalorder %s13, 0
    %p120 = por %p118, %p119
    %p121 = scmp.ne.s32.totalorder %s110, %s113
    %p122 = scmp.eq.s32.totalorder %s18, 3
    %p123 = por %p121, %p122
    %p124 = scmp.ne.s32.totalorder %s113, %s114
    %p125 = scmp.eq.s32.totalorder %s18, 0
    %p126 = por %p124, %p125
    %p127 = scmp.ne.s32.totalorder %s113, %s114
    %p128 = scmp.eq.s32.totalorder %s19, 3
    %p129 = por %p127, %p128
    %p131 = scmp.ne.s32.totalorder %s114, %s130
    %p132 = scmp.eq.s32.totalorder %s19, 0
    %p133 = por %p131, %p132
    %s134 = ssub.s32 %s21, %s28
    %s135 = ssub.s32 %s20, %s32
    %s136 = sor.u32 %s134, %s135
    %p137 = scmp.eq.s32.totalorder %s136, 0
    %s139 = sadd.s32 %s138, 1
    %s140 = scalar_select %p137, %s138, %s139
    %p143 = pneg %p137
    %p144 = scmp.eq.s32.totalorder %s13, 3
    %p145 = por %p143, %p144
    %p146 = scmp.ne.s32.totalorder %s138, %s141
    %p147 = scmp.eq.s32.totalorder %s13, 0
    %p148 = por %p146, %p147
    %p149 = scmp.ne.s32.totalorder %s138, %s141
    %p150 = scmp.eq.s32.totalorder %s18, 3
    %p151 = por %p149, %p150
    %p152 = scmp.ne.s32.totalorder %s141, %s142
    %p153 = scmp.eq.s32.totalorder %s18, 0
    %p154 = por %p152, %p153
    %p155 = scmp.ne.s32.totalorder %s141, %s142
    %p156 = scmp.eq.s32.totalorder %s19, 3
    %p157 = por %p155, %p156
    %p159 = scmp.ne.s32.totalorder %s142, %s158
    %p160 = scmp.eq.s32.totalorder %s19, 0
    %p161 = por %p159, %p160
    %s163 = sadd.s32 %s162, 1
    %p166 = scmp.eq.s32.totalorder %s13, 3
    %p167 = scmp.ne.s32.totalorder %s162, %s164
    %p168 = scmp.eq.s32.totalorder %s13, 0
    %p169 = por %p167, %p168
    %p170 = scmp.ne.s32.totalorder %s162, %s164
    %p171 = scmp.eq.s32.totalorder %s18, 3
    %p172 = por %p170, %p171
    %p173 = scmp.ne.s32.totalorder %s164, %s165
    %p174 = scmp.eq.s32.totalorder %s18, 0
    %p175 = por %p173, %p174
    %p176 = scmp.ne.s32.totalorder %s164, %s165
    %p177 = scmp.eq.s32.totalorder %s19, 3
    %p178 = por %p176, %p177
    %p180 = scmp.ne.s32.totalorder %s165, %s179
    %p181 = scmp.eq.s32.totalorder %s19, 0
    %p182 = por %p180, %p181
    %s184 = sadd.s32 %s183, 1
    %p187 = scmp.eq.s32.totalorder %s13, 3
    %p188 = scmp.ne.s32.totalorder %s183, %s185
    %p189 = scmp.eq.s32.totalorder %s13, 0
    %p190 = por %p188, %p189
    %p191 = scmp.ne.s32.totalorder %s183, %s185
    %p192 = scmp.eq.s32.totalorder %s18, 3
    %p193 = por %p191, %p192
    %p194 = scmp.ne.s32.totalorder %s185, %s186
    %p195 = scmp.eq.s32.totalorder %s18, 0
    %p196 = por %p194, %p195
    %p197 = scmp.ne.s32.totalorder %s185, %s186
    %p198 = scmp.eq.s32.totalorder %s19, 3
    %p199 = por %p197, %p198
    %p201 = scmp.ne.s32.totalorder %s186, %s200
    %p202 = scmp.eq.s32.totalorder %s19, 0
    %p203 = por %p201, %p202
    %s204 = ssub.s32 %s20, %s32
    %p205 = scmp.eq.s32.totalorder %s204, 0
    %s207 = sadd.s32 %s206, 1
    %s208 = scalar_select %p205, %s206, %s207
    %p211 = pneg %p205
    %p212 = scmp.eq.s32.totalorder %s13, 3
    %p213 = por %p211, %p212
    %p214 = scmp.ne.s32.totalorder %s206, %s209
    %p215 = scmp.eq.s32.totalorder %s13, 0
    %p216 = por %p214, %p215
    %p217 = scmp.ne.s32.totalorder %s206, %s209
    %p218 = scmp.eq.s32.totalorder %s18, 3
    %p219 = por %p217, %p218
    %p220 = scmp.ne.s32.totalorder %s209, %s210
    %p221 = scmp.eq.s32.totalorder %s18, 0
    %p222 = por %p220, %p221
    %p223 = scmp.ne.s32.totalorder %s209, %s210
    %p224 = scmp.eq.s32.totalorder %s19, 3
    %p225 = por %p223, %p224
    %p227 = scmp.ne.s32.totalorder %s210, %s226
    %p228 = scmp.eq.s32.totalorder %s19, 0
    %p229 = por %p227, %p228
    %p230 = scmp.le.s32.totalorder 1, %s13
    %p231 = scmp.lt.s32.totalorder %s13, 5
    %p232 = pnand %p230, %p231
    %p233 = pneg %p232
    // Predicated region
    $region9: #{homo_feature_rgcn_forward.9} parent=5 // pred_check
      _
    $region10: #{homo_feature_rgcn_forward.9} parent=5 // pred_check_branch
      %235 = sbr.rel (%p232) target = $region12
    $region11: #{homo_feature_rgcn_forward.9} parent=5 // pred_region
      %s236 = ssub.s32 %s13, 1
      // Predicated region
      $region13: #{homo_feature_rgcn_forward.9} parent=11 // pred_check
        %p237 = pneg %p74
      $region14: #{homo_feature_rgcn_forward.9} parent=11 // pred_check_branch
        %239 = sbr.rel (%p237) target = $region16
      $region15: #{homo_feature_rgcn_forward.9} parent=11 // pred_region
        _
      $region16: #{homo_feature_rgcn_forward.9} parent=11 // pred_fallthru
        _
      // Predicated region
      $region17: #{homo_feature_rgcn_forward.9} parent=11 // pred_check
        %p240 = pneg %p100
      $region18: #{homo_feature_rgcn_forward.9} parent=11 // pred_check_branch
        %242 = sbr.rel (%p240) target = $region20
      $region19: #{homo_feature_rgcn_forward.9} parent=11 // pred_region
        %s243 = smul.u32 3, %s22
        %p244 = scmp.lt.s32.totalorder %s243, 2
        %s245 = scalar_select %p244, %s243, 2
        %s246 = smul.addr %s245, 4
        %s247 = scalar_lea.vmem %s2, %s246
        %s248 = smul.u32 3, %s22
      $region20: #{homo_feature_rgcn_forward.9} parent=11 // pred_fallthru
        _
      // Predicated region
      $region21: #{homo_feature_rgcn_forward.9} parent=11 // pred_check
        %p249 = pneg %p175
      $region22: #{homo_feature_rgcn_forward.9} parent=11 // pred_check_branch
        %251 = sbr.rel (%p249) target = $region24
      $region23: #{homo_feature_rgcn_forward.9} parent=11 // pred_region
        _
      $region24: #{homo_feature_rgcn_forward.9} parent=11 // pred_fallthru
        _
      // Predicated region
      $region25: #{homo_feature_rgcn_forward.9} parent=11 // pred_check
        %p252 = pneg %p196
      $region26: #{homo_feature_rgcn_forward.9} parent=11 // pred_check_branch
        %254 = sbr.rel (%p252) target = $region28
      $region27: #{homo_feature_rgcn_forward.9} parent=11 // pred_region
        _
      $region28: #{homo_feature_rgcn_forward.9} parent=11 // pred_fallthru
        _
    $region12: #{homo_feature_rgcn_forward.9} parent=5 // pred_fallthru
      _
    %p255 = scmp.lt.s32.totalorder %s13, 4
    // Predicated region
    $region29: #{homo_feature_rgcn_forward.9} parent=5 // pred_check
      %p256 = pneg %p255
    $region30: #{homo_feature_rgcn_forward.9} parent=5 // pred_check_branch
      %258 = sbr.rel (%p256) target = $region32
    $region31: #{homo_feature_rgcn_forward.9} parent=5 // pred_region
      // Predicated region
      $region33: #{homo_feature_rgcn_forward.9} parent=31 // pred_check
        %p259 = pneg %p47
      $region34: #{homo_feature_rgcn_forward.9} parent=31 // pred_check_branch
        %261 = sbr.rel (%p259) target = $region36
      $region35: #{homo_feature_rgcn_forward.9} parent=31 // pred_region
        %s262 = smul.u32 3, %s20
        %p263 = scmp.lt.s32.totalorder %s21, 3
        %s264 = scalar_select %p263, %s21, 3
        %p265 = scmp.lt.s32.totalorder %s262, 2
        %s266 = scalar_select %p265, %s262, 2
        %s267 = smul.addr %s264, 3
        %s268 = sadd.s32 %s266, %s267
        %s269 = smul.addr %s268, 4
        %s270 = scalar_lea.vmem %s0, %s269
        %s271 = smul.u32 3, %s20
      $region36: #{homo_feature_rgcn_forward.9} parent=31 // pred_fallthru
        _
      // Predicated region
      $region37: #{homo_feature_rgcn_forward.9} parent=31 // pred_check
        %p272 = pneg %p120
      $region38: #{homo_feature_rgcn_forward.9} parent=31 // pred_check_branch
        %274 = sbr.rel (%p272) target = $region40
      $region39: #{homo_feature_rgcn_forward.9} parent=31 // pred_region
        %p275 = scmp.lt.s32.totalorder %s21, 3
        %s276 = scalar_select %p275, %s21, 3
        %s277 = smul.addr %s276, 4
        %s278 = smul.addr %s277, 4
        %s279 = scalar_lea.vmem %s3, %s278
      $region40: #{homo_feature_rgcn_forward.9} parent=31 // pred_fallthru
        _
      // Predicated region
      $region41: #{homo_feature_rgcn_forward.9} parent=31 // pred_check
        %p280 = pneg %p148
      $region42: #{homo_feature_rgcn_forward.9} parent=31 // pred_check_branch
        %282 = sbr.rel (%p280) target = $region44
      $region43: #{homo_feature_rgcn_forward.9} parent=31 // pred_region
        %s283 = smul.u32 3, %s20
        %p284 = scmp.lt.s32.totalorder %s21, 3
        %s285 = scalar_select %p284, %s21, 3
        %p286 = scmp.lt.s32.totalorder %s283, 2
        %s287 = scalar_select %p286, %s283, 2
        %s288 = smul.addr %s285, 3
        %s289 = sadd.s32 %s287, %s288
        %s290 = smul.addr %s289, 8
        %s291 = scalar_lea.vmem %s4, %s290
        %s292 = smul.u32 3, %s20
      $region44: #{homo_feature_rgcn_forward.9} parent=31 // pred_fallthru
        _
    $region32: #{homo_feature_rgcn_forward.9} parent=5 // pred_fallthru
      _
    %p293 = scmp.le.s32.totalorder 1, %s13
    %p294 = scmp.lt.s32.totalorder %s13, 5
    %p295 = pnand %p293, %p294
    %p296 = pneg %p295
    // Predicated region
    $region45: #{homo_feature_rgcn_forward.9} parent=5 // pred_check
      _
    $region46: #{homo_feature_rgcn_forward.9} parent=5 // pred_check_branch
      %298 = sbr.rel (%p295) target = $region48
    $region47: #{homo_feature_rgcn_forward.9} parent=5 // pred_region
      %s299 = ssub.s32 %s13, 1
      %s300 = smul.u32 3, %s22
      %p301 = scmp.lt.s32.totalorder %s23, 3
      %s302 = scalar_select %p301, %s23, 3
      %p303 = scmp.lt.s32.totalorder %s300, 2
      %s304 = scalar_select %p303, %s300, 2
      %s305 = smul.addr %s302, 3
      %s306 = sadd.s32 %s304, %s305
      %s307 = smul.addr %s306, 4
      %s308 = scalar_lea.vmem %s0, %s307
      %p309 = pneg %p53
      %p310 = pneg %p50
      %p311 = pneg %p74
      %p312 = pneg %p71
      %s313 = smul.u32 3, %s22
      %p314 = scmp.lt.s32.totalorder %s313, 2
      %s315 = scalar_select %p314, %s313, 2
      %s316 = smul.addr %s315, 4
      %s317 = scalar_lea.vmem %s2, %s316
      %p318 = pneg %p100
      %p319 = pneg %p97
      %p320 = scmp.lt.s32.totalorder %s23, 3
      %s321 = scalar_select %p320, %s23, 3
      %s322 = smul.addr %s321, 4
      %s323 = smul.addr %s322, 4
      %s324 = scalar_lea.vmem %s3, %s323
      %p325 = pneg %p126
      %p326 = pneg %p123
      %s327 = smul.u32 3, %s22
      %p328 = scmp.lt.s32.totalorder %s23, 3
      %s329 = scalar_select %p328, %s23, 3
      %p330 = scmp.lt.s32.totalorder %s327, 2
      %s331 = scalar_select %p330, %s327, 2
      %s332 = smul.addr %s329, 3
      %s333 = sadd.s32 %s331, %s332
      %s334 = smul.addr %s333, 8
      %s335 = scalar_lea.vmem %s4, %s334
      %p336 = pneg %p154
      %p337 = pneg %p151
      %p338 = pneg %p175
      %p339 = pneg %p172
      %p340 = pneg %p196
      %p341 = pneg %p193
      %p342 = pneg %p222
      %p343 = pneg %p219
      %s344 = smul.u32 3, %s22
      %p345 = scmp.lt.s32.totalorder %s344, 2
      %s346 = scalar_select %p345, %s344, 2
      %s347 = smul.addr %s346, 8
      %s348 = scalar_lea.vmem %s7, %s347
      %s349 = smul.u32 3, %s22
      %p350 = scmp.lt.s32.totalorder %s23, 3
      %s351 = scalar_select %p350, %s23, 3
      %p352 = scmp.lt.s32.totalorder %s349, 2
      %s353 = scalar_select %p352, %s349, 2
      %s354 = smul.addr %s351, 3
      %s355 = sadd.s32 %s353, %s354
      %s356 = smul.addr %s355, 4
      %s357 = scalar_lea.vmem %s0, %s356
      %s358 = smul.u32 3, %s22
      %s359 = smul.u32 3, %s22
      %p360 = scmp.lt.s32.totalorder %s359, 2
      %s361 = scalar_select %p360, %s359, 2
      %s362 = smul.addr %s361, 4
      %s363 = scalar_lea.vmem %s2, %s362
      %s364 = smul.u32 3, %s22
      %p365 = scmp.lt.s32.totalorder %s23, 3
      %s366 = scalar_select %p365, %s23, 3
      %s367 = smul.addr %s366, 4
      %s368 = smul.addr %s367, 4
      %s369 = scalar_lea.vmem %s3, %s368
      %s370 = smul.u32 3, %s22
      %p371 = scmp.lt.s32.totalorder %s23, 3
      %s372 = scalar_select %p371, %s23, 3
      %p373 = scmp.lt.s32.totalorder %s370, 2
      %s374 = scalar_select %p373, %s370, 2
      %s375 = smul.addr %s372, 3
      %s376 = sadd.s32 %s374, %s375
      %s377 = smul.addr %s376, 8
      %s378 = scalar_lea.vmem %s4, %s377
      %s379 = smul.u32 3, %s22
      %s380 = smul.u32 3, %s22
      %p381 = scmp.lt.s32.totalorder %s380, 2
      %s382 = scalar_select %p381, %s380, 2
      %s383 = smul.addr %s382, 8
      %s384 = scalar_lea.vmem %s7, %s383
      %s385 = smul.u32 3, %s22
      %p387 = scmp.eq.s32.totalorder %s23, 0
      // Predicated region
      $region49: #{homo_feature_rgcn_forward.9} parent=47 // pred_check
        %p388 = pneg %p387
      $region50: #{homo_feature_rgcn_forward.9} parent=47 // pred_check_branch
        %390 = sbr.rel (%p388) target = $region52
      $region51: #{homo_feature_rgcn_forward.9} parent=47 // pred_region
        %v391 = vld [vmem:[%s363] sm:$0xf]
        %v392 = vld [vmem:[%s363 + $0x4] sm:$0xf]
        %v393 = vld [vmem:[%s363 + $0x8] sm:$0xf]
        %v394 = vld [vmem:[%s5] sm:$0xf]
        %v395 = vld [vmem:[%s5 + $0x4] sm:$0xf]
        %v396 = vld [vmem:[%s5 + $0x8] sm:$0xf]
        %v397 = vld [vmem:[%s5 + $0xc] sm:$0xf]
        %v398 = vld [vmem:[%s6] sm:$0x1]
        %v400 = vlaneseq
        %v401 = vshrl.u32 %v400, 7
        %v402 = vsub.s32 0, %v401
        %v403 = vrot.slane %v398, %v402
        %v408 = vunpack.c.l.b16 %v391
        %v409 = vunpack.c.l.b16 %v392
        %v410 = vunpack.c.l.b16 %v393
        %v411 = vpack.c.b16 %v409, %v408
        %v412 = vpack.c.b16 %v410, %v410
        %v417 = vunpack.c.l.b16 %v394
        %v418 = vunpack.c.l.b16 %v395
        %v419 = vunpack.c.l.b16 %v396
        %v420 = vunpack.c.l.b16 %v397
        %v421 = vpack.c.b16 %v418, %v417
        %v422 = vpack.c.b16 %v420, %v419
        %vm425 = vcmask 261120
        %v427 = vsel %vm425, %v411, 0
        %v430 = vsel %vm425, %v412, 0
        %432 = vmatprep.subr.bf16.mxu0 0
        %433 = vmatpush1.bf16.msra.mxu0 %v421
        %434 = vmatprep.subr.bf16.mxu0 0
        %435 = vmatpush1.bf16.msra.mxu0 %v422
        %436 = vmatprep.subr.bf16.mxu0 0
        %437 = vmatpush1.bf16.msra.mxu0 0
        %438 = vmatprep.subr.bf16.mxu0 0
        %439 = vmatpush1.bf16.msra.mxu0 0
        %440 = vmatprep.subr.bf16.mxu0 0
        %441 = vmatpush1.bf16.msra.mxu0 0
        %442 = vmatprep.subr.bf16.mxu0 0
        %443 = vmatpush1.bf16.msra.mxu0 0
        %444 = vmatprep.subr.bf16.mxu0 0
        %445 = vmatpush1.bf16.msra.mxu0 0
        %446 = vmatprep.subr.bf16.mxu0 0
        %447 = vmatpush1.bf16.msra.mxu0 0
        %448 = vmatprep.subr.bf16.mxu0 0
        %449 = vmatpush1.bf16.msra.mxu0 0
        %450 = vmatprep.subr.bf16.mxu0 0
        %451 = vmatpush1.bf16.msra.mxu0 0
        %452 = vmatprep.subr.bf16.mxu0 0
        %453 = vmatpush1.bf16.msra.mxu0 0
        %454 = vmatprep.subr.bf16.mxu0 0
        %455 = vmatpush1.bf16.msra.mxu0 0
        %456 = vmatprep.subr.bf16.mxu0 0
        %457 = vmatpush1.bf16.msra.mxu0 0
        %458 = vmatprep.subr.bf16.mxu0 0
        %459 = vmatpush1.bf16.msra.mxu0 0
        %460 = vmatprep.subr.bf16.mxu0 0
        %461 = vmatpush1.bf16.msra.mxu0 0
        %462 = vmatprep.subr.bf16.mxu0 0
        %463 = vmatpush1.bf16.msra.mxu0 0
        %464 = vmatprep.mubr.bf16.mxu0 0
        %465 = vmatmul.mubr.bf16.gmra.mrb[0].mxu0 %v427
        %v466 = vpop.f32.mrb[0].mxu0
        %v467 = vadd.f32 %v403, %v466
        %v468 = vpop.f32.mrb[0].mxu0
        %v469 = vpop.f32.mrb[0].mxu0
        %v470 = vadd.f32 %v403, %v469
        %v471 = vpop.f32.mrb[0].mxu0
        %472 = vmatprep.mubr.bf16.mxu0 0
        %473 = vmatmul.mubr.bf16.gmra.mrb[0].mxu0 %v430
        %v474 = vpop.f32.mrb[0].mxu0
        %v475 = vadd.f32 %v403, %v474
        %v476 = vpop.f32.mrb[0].mxu0
        %v477 = vpop.f32.mrb[0].mxu0
        %v478 = vpop.f32.mrb[0].mxu0
        %479 = vdwg.mxu0
        %480 = vst [vmem:[%s384] sm:$0xff] %v467
        %481 = vst [vmem:[%s384 + $0x8] sm:$0xff] %v470
        %482 = vst [vmem:[%s384 + $0x10] sm:$0xff] %v475
      $region52: #{homo_feature_rgcn_forward.9} parent=47 // pred_fallthru
        _
      %v483 = vld [vmem:[%s357] sm:$0xf]
      %v484 = vld [vmem:[%s357 + $0x4] sm:$0xf]
      %v485 = vld [vmem:[%s357 + $0x8] sm:$0xf]
      %v486 = vld [vmem:[%s1] sm:$0xf]
      %v487 = vld [vmem:[%s1 + $0x4] sm:$0xf]
      %v488 = vld [vmem:[%s1 + $0x8] sm:$0xf]
      %v492 = vunpack.c.l.b16 %v483
      %v493 = vunpack.c.l.b16 %v484
      %v494 = vunpack.c.l.b16 %v485
      %v495 = vpack.c.b16 %v493, %v492
      %v496 = vpack.c.b16 %v494, %v494
      %v500 = vunpack.c.l.b16 %v486
      %v501 = vunpack.c.l.b16 %v487
      %v502 = vunpack.c.l.b16 %v488
      %v503 = vpack.c.b16 %v501, %v500
      %v504 = vpack.c.b16 %v502, %v502
      %vm506 = vcmask 195584
      %v508 = vsel %vm506, %v495, 0
      %v511 = vsel %vm506, %v496, 0
      %vm513 = vcmask 1043456
      %v515 = vsel %vm513, %v504, 0
      %517 = vmatprep.subr.bf16.mxu0 0
      %518 = vmatpush1.bf16.msra.mxu0 %v503
      %519 = vmatprep.subr.bf16.mxu0 0
      %520 = vmatpush1.bf16.msra.mxu0 %v515
      %521 = vmatprep.subr.bf16.mxu0 0
      %522 = vmatpush1.bf16.msra.mxu0 0
      %523 = vmatprep.subr.bf16.mxu0 0
      %524 = vmatpush1.bf16.msra.mxu0 0
      %525 = vmatprep.subr.bf16.mxu0 0
      %526 = vmatpush1.bf16.msra.mxu0 0
      %527 = vmatprep.subr.bf16.mxu0 0
      %528 = vmatpush1.bf16.msra.mxu0 0
      %529 = vmatprep.subr.bf16.mxu0 0
      %530 = vmatpush1.bf16.msra.mxu0 0
      %531 = vmatprep.subr.bf16.mxu0 0
      %532 = vmatpush1.bf16.msra.mxu0 0
      %533 = vmatprep.subr.bf16.mxu0 0
      %534 = vmatpush1.bf16.msra.mxu0 0
      %535 = vmatprep.subr.bf16.mxu0 0
      %536 = vmatpush1.bf16.msra.mxu0 0
      %537 = vmatprep.subr.bf16.mxu0 0
      %538 = vmatpush1.bf16.msra.mxu0 0
      %539 = vmatprep.subr.bf16.mxu0 0
      %540 = vmatpush1.bf16.msra.mxu0 0
      %541 = vmatprep.subr.bf16.mxu0 0
      %542 = vmatpush1.bf16.msra.mxu0 0
      %543 = vmatprep.subr.bf16.mxu0 0
      %544 = vmatpush1.bf16.msra.mxu0 0
      %545 = vmatprep.subr.bf16.mxu0 0
      %546 = vmatpush1.bf16.msra.mxu0 0
      %547 = vmatprep.subr.bf16.mxu0 0
      %548 = vmatpush1.bf16.msra.mxu0 0
      %549 = vmatprep.mubr.bf16.mxu0 0
      %550 = vmatmul.mubr.bf16.gmra.mrb[0].mxu0 %v508
      %v551 = vpop.f32.mrb[0].mxu0
      %v552 = vadd.f32 0.0, %v551
      %v553 = vpop.f32.mrb[0].mxu0
      %v554 = vpop.f32.mrb[0].mxu0
      %v555 = vadd.f32 0.0, %v554
      %v556 = vpop.f32.mrb[0].mxu0
      %557 = vmatprep.mubr.bf16.mxu0 0
      %558 = vmatmul.mubr.bf16.gmra.mrb[0].mxu0 %v511
      %v559 = vpop.f32.mrb[0].mxu0
      %v560 = vadd.f32 0.0, %v559
      %v561 = vpop.f32.mrb[0].mxu0
      %v562 = vpop.f32.mrb[0].mxu0
      %v563 = vpop.f32.mrb[0].mxu0
      %564 = vdwg.mxu0
      %v565 = vld [vmem:[%s378] sm:$0xff]
      %v566 = vld [vmem:[%s378 + $0x8] sm:$0xff]
      %v567 = vld [vmem:[%s378 + $0x10] sm:$0xff]
      %569 = vset.pattern.permute.xlu0 0
      %570 = vperm.xlu0 %569, %v565
      %v571 = vpop.permute.xlu0 %570
      %574 = vset.pattern.permute.xlu0 0
      %575 = vperm.xlu0 %574, %v566
      %v576 = vpop.permute.xlu0 %575
      %579 = vset.pattern.permute.xlu0 0
      %580 = vperm.xlu0 %579, %v567
      %v581 = vpop.permute.xlu0 %580
      %v583 = vmul.f32 %v552, %v571
      %v584 = vmul.f32 %v555, %v576
      %v585 = vmul.f32 %v560, %v581
      %v586 = vld [vmem:[%s384] sm:$0xff]
      %v587 = vld [vmem:[%s384 + $0x8] sm:$0xff]
      %v588 = vld [vmem:[%s384 + $0x10] sm:$0xff]
      %v589 = vpack.c.bf16 %v584, %v583
      %v590 = vpack.c.bf16 %v585, %v585
      %v591 = vld [vmem:[%s369] sm:$0xf]
      %v592 = vld [vmem:[%s369 + $0x4] sm:$0xf]
      %v593 = vld [vmem:[%s369 + $0x8] sm:$0xf]
      %v594 = vld [vmem:[%s369 + $0xc] sm:$0xf]
      %v599 = vunpack.c.l.b16 %v591
      %v600 = vunpack.c.l.b16 %v592
      %v601 = vunpack.c.l.b16 %v593
      %v602 = vunpack.c.l.b16 %v594
      %v603 = vpack.c.b16 %v600, %v599
      %v604 = vpack.c.b16 %v602, %v601
      %vm607 = vcmask 261120
      %v609 = vsel %vm607, %v589, 0
      %v612 = vsel %vm607, %v590, 0
      %614 = vmatprep.subr.bf16.mxu0 0
      %615 = vmatpush1.bf16.msra.mxu0 %v603
      %616 = vmatprep.subr.bf16.mxu0 0
      %617 = vmatpush1.bf16.msra.mxu0 %v604
      %618 = vmatprep.subr.bf16.mxu0 0
      %619 = vmatpush1.bf16.msra.mxu0 0
      %620 = vmatprep.subr.bf16.mxu0 0
      %621 = vmatpush1.bf16.msra.mxu0 0
      %622 = vmatprep.subr.bf16.mxu0 0
      %623 = vmatpush1.bf16.msra.mxu0 0
      %624 = vmatprep.subr.bf16.mxu0 0
      %625 = vmatpush1.bf16.msra.mxu0 0
      %626 = vmatprep.subr.bf16.mxu0 0
      %627 = vmatpush1.bf16.msra.mxu0 0
      %628 = vmatprep.subr.bf16.mxu0 0
      %629 = vmatpush1.bf16.msra.mxu0 0
      %630 = vmatprep.subr.bf16.mxu0 0
      %631 = vmatpush1.bf16.msra.mxu0 0
      %632 = vmatprep.subr.bf16.mxu0 0
      %633 = vmatpush1.bf16.msra.mxu0 0
      %634 = vmatprep.subr.bf16.mxu0 0
      %635 = vmatpush1.bf16.msra.mxu0 0
      %636 = vmatprep.subr.bf16.mxu0 0
      %637 = vmatpush1.bf16.msra.mxu0 0
      %638 = vmatprep.subr.bf16.mxu0 0
      %639 = vmatpush1.bf16.msra.mxu0 0
      %640 = vmatprep.subr.bf16.mxu0 0
      %641 = vmatpush1.bf16.msra.mxu0 0
      %642 = vmatprep.subr.bf16.mxu0 0
      %643 = vmatpush1.bf16.msra.mxu0 0
      %644 = vmatprep.subr.bf16.mxu0 0
      %645 = vmatpush1.bf16.msra.mxu0 0
      %646 = vmatprep.mubr.bf16.mxu0 0
      %647 = vmatmul.mubr.bf16.gmra.mrb[0].mxu0 %v609
      %v648 = vpop.f32.mrb[0].mxu0
      %v649 = vadd.f32 0.0, %v648
      %v650 = vpop.f32.mrb[0].mxu0
      %v651 = vpop.f32.mrb[0].mxu0
      %v652 = vadd.f32 0.0, %v651
      %v653 = vpop.f32.mrb[0].mxu0
      %654 = vmatprep.mubr.bf16.mxu0 0
      %655 = vmatmul.mubr.bf16.gmra.mrb[0].mxu0 %v612
      %v656 = vpop.f32.mrb[0].mxu0
      %v657 = vadd.f32 0.0, %v656
      %v658 = vpop.f32.mrb[0].mxu0
      %v659 = vpop.f32.mrb[0].mxu0
      %v660 = vpop.f32.mrb[0].mxu0
      %661 = vdwg.mxu0
      %v662 = vadd.f32 %v586, %v649
      %v663 = vadd.f32 %v587, %v652
      %v664 = vadd.f32 %v588, %v657
      %665 = vst [vmem:[%s384] sm:$0xff] %v662
      %666 = vst [vmem:[%s384 + $0x8] sm:$0xff] %v663
      %667 = vst [vmem:[%s384 + $0x10] sm:$0xff] %v664
      %s668 = smul.u32 3, %s22
      %p669 = scmp.lt.s32.totalorder %s668, 2
      %s670 = scalar_select %p669, %s668, 2
      %s671 = smul.addr %s670, 8
      %s672 = scalar_lea.vmem %s7, %s671
      // Predicated region
      $region53: #{homo_feature_rgcn_forward.9} parent=47 // pred_check
        %p673 = pneg %p219
      $region54: #{homo_feature_rgcn_forward.9} parent=47 // pred_check_branch
        %675 = sbr.rel (%p673) target = $region56
      $region55: #{homo_feature_rgcn_forward.9} parent=47 // pred_region
        %s676 = smul.u32 3, %s22
      $region56: #{homo_feature_rgcn_forward.9} parent=47 // pred_fallthru
        _
      // Predicated region
      $region57: #{homo_feature_rgcn_forward.9} parent=47 // pred_check
        %p677 = pneg %p219
      $region58: #{homo_feature_rgcn_forward.9} parent=47 // pred_check_branch
        %679 = sbr.rel (%p677) target = $region60
      $region59: #{homo_feature_rgcn_forward.9} parent=47 // pred_region
        %s680 = smul.u32 3, %s22
        %p681 = scmp.lt.s32.totalorder %s680, 2
        %s682 = scalar_select %p681, %s680, 2
        %s683 = smul.addr %s682, 8
        %s684 = scalar_lea.vmem %s7, %s683
      $region60: #{homo_feature_rgcn_forward.9} parent=47 // pred_fallthru
        _
    $region48: #{homo_feature_rgcn_forward.9} parent=5 // pred_fallthru
      _
    %p685 = scmp.le.s32.totalorder 2, %s13
    // Predicated region
    $region61: #{homo_feature_rgcn_forward.9} parent=5 // pred_check
      %p686 = pneg %p685
    $region62: #{homo_feature_rgcn_forward.9} parent=5 // pred_check_branch
      %688 = sbr.rel (%p686) target = $region64
    $region63: #{homo_feature_rgcn_forward.9} parent=5 // pred_region
      %s689 = ssub.s32 %s13, 2
    $region64: #{homo_feature_rgcn_forward.9} parent=5 // pred_fallthru
      _
  $region6: #{homo_feature_rgcn_forward.9} parent=0 // loop_footer
    %s17 = sadd.s32 1, %s13
  $region7: #{homo_feature_rgcn_forward.9} parent=0 // loop_footer_branch
    %12 = sbr.rel target = $region3
  $region8: #{homo_feature_rgcn_forward.9} parent=0 // loop_exit
    _

// kernel: homo_feature_rgcn_forward.8
$region0: #{homo_feature_rgcn_forward.8}
  #allocation0 [shape = 'u32[]', space=smem, size = 0x4, offset = 0x4, fixed_abs, tag = 'smem constant byte address 0x4 - core index']
  #allocation1 [shape = 'u32[144,128]{1,0:T(1,128)}', space=vmem, size = 0x12000, scoped, tag = 'internal scratch']
  %s0 = inlined_call_operand.vmem [shape: bf16[4,24,24], index: 0, kind: input, shape index: {}]
  %s1 = inlined_call_operand.vmem [shape: bf16[24,16], index: 1, kind: input, shape index: {}, may-alias: {1,2}]
  %s2 = inlined_call_operand.vmem [shape: bf16[24,16], index: 2, kind: input, shape index: {}, may-alias: {1,2}]
  %s3 = inlined_call_operand.vmem [shape: bf16[4,16,128], index: 3, kind: input, shape index: {}]
  %s4 = inlined_call_operand.vmem [shape: f32[4,24,1], index: 4, kind: input, shape index: {}]
  %s5 = inlined_call_operand.vmem [shape: bf16[16,128], index: 5, kind: input, shape index: {}]
  %s6 = inlined_call_operand.vmem [shape: f32[1,128], index: 6, kind: input, shape index: {}]
  %s7 = inlined_call_operand.vmem [shape: f32[24,128], index: 7, kind: output, shape index: {}]
  %s8 = sld [smem:[#allocation0]]
  $region65: #{homo_feature_rgcn_forward.8} parent=0
    _
  %s10 = ssub.s32 1, %s8
  %s11 = scalar_select 0, %s10, %s8
  loop: start=0, step=1, limit=6
  $region2: #{homo_feature_rgcn_forward.8} parent=0 // loop_pre_header
    _
  $region3: #{homo_feature_rgcn_forward.8} parent=0 // loop_header
    %s13 = sphi 0, %s17
    %p14 = scmp.ge.s32.totalorder %s13, 6
    %s20 = sphi 0, %s32
    %s21 = sphi 0, %s28
    %s22 = sphi 0, %s20
    %s23 = sphi 0, %s21
    %s24 = sphi 0, %s22
    %s25 = sphi 0, %s23
    %s37 = sphi 0, %s39
    %s40 = sphi 0, %s37
    %s41 = sphi 0, %s40
    %s57 = sphi 0, %s41
    %s61 = sphi 0, %s61
    %s63 = sphi 0, %s61
    %s64 = sphi 0, %s63
    %s78 = sphi 0, %s64
    %s84 = sphi 0, %s86
    %s87 = sphi 0, %s84
    %s88 = sphi 0, %s87
    %s104 = sphi 0, %s88
    %s110 = sphi 0, %s112
    %s113 = sphi 0, %s110
    %s114 = sphi 0, %s113
    %s130 = sphi 0, %s114
    %s138 = sphi 0, %s140
    %s141 = sphi 0, %s138
    %s142 = sphi 0, %s141
    %s158 = sphi 0, %s142
    %s162 = sphi 0, %s162
    %s164 = sphi 0, %s162
    %s165 = sphi 0, %s164
    %s179 = sphi 0, %s165
    %s183 = sphi 0, %s183
    %s185 = sphi 0, %s183
    %s186 = sphi 0, %s185
    %s200 = sphi 0, %s186
    %s206 = sphi 0, %s208
    %s209 = sphi 0, %s206
    %s210 = sphi 0, %s209
    %s226 = sphi 0, %s210
  $region4: #{homo_feature_rgcn_forward.8} parent=0 // loop_header_branch
    %16 = sbr.rel (%p14) target = $region8
  $region5: #{homo_feature_rgcn_forward.8} parent=0 // loop_body
    %s18 = ssub.s32 %s13, 1
    %s19 = ssub.s32 %s13, 2
    %s26 = sadd.s32 1, %s21
    %p27 = scmp.ge.s32.totalorder %s26, 4
    %s28 = scalar_select %p27, 0, %s26
    %s29 = sadd.s32 1, %s20
    %s30 = scalar_select %p27, %s29, %s20
    %p31 = scmp.ge.s32.totalorder %s30, 1
    %s32 = scalar_select %p31, 0, %s30
    %s33 = ssub.s32 %s21, %s28
    %s34 = ssub.s32 %s20, %s32
    %s35 = sor.u32 %s33, %s34
    %p36 = scmp.eq.s32.totalorder %s35, 0
    %s38 = sadd.s32 %s37, 1
    %s39 = scalar_select %p36, %s37, %s38
    %p42 = pneg %p36
    %p43 = scmp.eq.s32.totalorder %s13, 3
    %p44 = por %p42, %p43
    %p45 = scmp.ne.s32.totalorder %s37, %s40
    %p46 = scmp.eq.s32.totalorder %s13, 0
    %p47 = por %p45, %p46
    %p48 = scmp.ne.s32.totalorder %s37, %s40
    %p49 = scmp.eq.s32.totalorder %s18, 3
    %p50 = por %p48, %p49
    %p51 = scmp.ne.s32.totalorder %s40, %s41
    %p52 = scmp.eq.s32.totalorder %s18, 0
    %p53 = por %p51, %p52
    %p54 = scmp.ne.s32.totalorder %s40, %s41
    %p55 = scmp.eq.s32.totalorder %s19, 3
    %p56 = por %p54, %p55
    %p58 = scmp.ne.s32.totalorder %s41, %s57
    %p59 = scmp.eq.s32.totalorder %s19, 0
    %p60 = por %p58, %p59
    %s62 = sadd.s32 %s61, 1
    %p65 = scmp.eq.s32.totalorder %s13, 3
    %p66 = scmp.ne.s32.totalorder %s61, %s63
    %p67 = scmp.eq.s32.totalorder %s13, 0
    %p68 = por %p66, %p67
    %p69 = scmp.ne.s32.totalorder %s61, %s63
    %p70 = scmp.eq.s32.totalorder %s18, 3
    %p71 = por %p69, %p70
    %p72 = scmp.ne.s32.totalorder %s63, %s64
    %p73 = scmp.eq.s32.totalorder %s18, 0
    %p74 = por %p72, %p73
    %p75 = scmp.ne.s32.totalorder %s63, %s64
    %p76 = scmp.eq.s32.totalorder %s19, 3
    %p77 = por %p75, %p76
    %p79 = scmp.ne.s32.totalorder %s64, %s78
    %p80 = scmp.eq.s32.totalorder %s19, 0
    %p81 = por %p79, %p80
    %s82 = ssub.s32 %s20, %s32
    %p83 = scmp.eq.s32.totalorder %s82, 0
    %s85 = sadd.s32 %s84, 1
    %s86 = scalar_select %p83, %s84, %s85
    %p89 = pneg %p83
    %p90 = scmp.eq.s32.totalorder %s13, 3
    %p91 = por %p89, %p90
    %p92 = scmp.ne.s32.totalorder %s84, %s87
    %p93 = scmp.eq.s32.totalorder %s13, 0
    %p94 = por %p92, %p93
    %p95 = scmp.ne.s32.totalorder %s84, %s87
    %p96 = scmp.eq.s32.totalorder %s18, 3
    %p97 = por %p95, %p96
    %p98 = scmp.ne.s32.totalorder %s87, %s88
    %p99 = scmp.eq.s32.totalorder %s18, 0
    %p100 = por %p98, %p99
    %p101 = scmp.ne.s32.totalorder %s87, %s88
    %p102 = scmp.eq.s32.totalorder %s19, 3
    %p103 = por %p101, %p102
    %p105 = scmp.ne.s32.totalorder %s88, %s104
    %p106 = scmp.eq.s32.totalorder %s19, 0
    %p107 = por %p105, %p106
    %s108 = ssub.s32 %s21, %s28
    %p109 = scmp.eq.s32.totalorder %s108, 0
    %s111 = sadd.s32 %s110, 1
    %s112 = scalar_select %p109, %s110, %s111
    %p115 = pneg %p109
    %p116 = scmp.eq.s32.totalorder %s13, 3
    %p117 = por %p115, %p116
    %p118 = scmp.ne.s32.totalorder %s110, %s113
    %p119 = scmp.eq.s32.totalorder %s13, 0
    %p120 = por %p118, %p119
    %p121 = scmp.ne.s32.totalorder %s110, %s113
    %p122 = scmp.eq.s32.totalorder %s18, 3
    %p123 = por %p121, %p122
    %p124 = scmp.ne.s32.totalorder %s113, %s114
    %p125 = scmp.eq.s32.totalorder %s18, 0
    %p126 = por %p124, %p125
    %p127 = scmp.ne.s32.totalorder %s113, %s114
    %p128 = scmp.eq.s32.totalorder %s19, 3
    %p129 = por %p127, %p128
    %p131 = scmp.ne.s32.totalorder %s114, %s130
    %p132 = scmp.eq.s32.totalorder %s19, 0
    %p133 = por %p131, %p132
    %s134 = ssub.s32 %s21, %s28
    %s135 = ssub.s32 %s20, %s32
    %s136 = sor.u32 %s134, %s135
    %p137 = scmp.eq.s32.totalorder %s136, 0
    %s139 = sadd.s32 %s138, 1
    %s140 = scalar_select %p137, %s138, %s139
    %p143 = pneg %p137
    %p144 = scmp.eq.s32.totalorder %s13, 3
    %p145 = por %p143, %p144
    %p146 = scmp.ne.s32.totalorder %s138, %s141
    %p147 = scmp.eq.s32.totalorder %s13, 0
    %p148 = por %p146, %p147
    %p149 = scmp.ne.s32.totalorder %s138, %s141
    %p150 = scmp.eq.s32.totalorder %s18, 3
    %p151 = por %p149, %p150
    %p152 = scmp.ne.s32.totalorder %s141, %s142
    %p153 = scmp.eq.s32.totalorder %s18, 0
    %p154 = por %p152, %p153
    %p155 = scmp.ne.s32.totalorder %s141, %s142
    %p156 = scmp.eq.s32.totalorder %s19, 3
    %p157 = por %p155, %p156
    %p159 = scmp.ne.s32.totalorder %s142, %s158
    %p160 = scmp.eq.s32.totalorder %s19, 0
    %p161 = por %p159, %p160
    %s163 = sadd.s32 %s162, 1
    %p166 = scmp.eq.s32.totalorder %s13, 3
    %p167 = scmp.ne.s32.totalorder %s162, %s164
    %p168 = scmp.eq.s32.totalorder %s13, 0
    %p169 = por %p167, %p168
    %p170 = scmp.ne.s32.totalorder %s162, %s164
    %p171 = scmp.eq.s32.totalorder %s18, 3
    %p172 = por %p170, %p171
    %p173 = scmp.ne.s32.totalorder %s164, %s165
    %p174 = scmp.eq.s32.totalorder %s18, 0
    %p175 = por %p173, %p174
    %p176 = scmp.ne.s32.totalorder %s164, %s165
    %p177 = scmp.eq.s32.totalorder %s19, 3
    %p178 = por %p176, %p177
    %p180 = scmp.ne.s32.totalorder %s165, %s179
    %p181 = scmp.eq.s32.totalorder %s19, 0
    %p182 = por %p180, %p181
    %s184 = sadd.s32 %s183, 1
    %p187 = scmp.eq.s32.totalorder %s13, 3
    %p188 = scmp.ne.s32.totalorder %s183, %s185
    %p189 = scmp.eq.s32.totalorder %s13, 0
    %p190 = por %p188, %p189
    %p191 = scmp.ne.s32.totalorder %s183, %s185
    %p192 = scmp.eq.s32.totalorder %s18, 3
    %p193 = por %p191, %p192
    %p194 = scmp.ne.s32.totalorder %s185, %s186
    %p195 = scmp.eq.s32.totalorder %s18, 0
    %p196 = por %p194, %p195
    %p197 = scmp.ne.s32.totalorder %s185, %s186
    %p198 = scmp.eq.s32.totalorder %s19, 3
    %p199 = por %p197, %p198
    %p201 = scmp.ne.s32.totalorder %s186, %s200
    %p202 = scmp.eq.s32.totalorder %s19, 0
    %p203 = por %p201, %p202
    %s204 = ssub.s32 %s20, %s32
    %p205 = scmp.eq.s32.totalorder %s204, 0
    %s207 = sadd.s32 %s206, 1
    %s208 = scalar_select %p205, %s206, %s207
    %p211 = pneg %p205
    %p212 = scmp.eq.s32.totalorder %s13, 3
    %p213 = por %p211, %p212
    %p214 = scmp.ne.s32.totalorder %s206, %s209
    %p215 = scmp.eq.s32.totalorder %s13, 0
    %p216 = por %p214, %p215
    %p217 = scmp.ne.s32.totalorder %s206, %s209
    %p218 = scmp.eq.s32.totalorder %s18, 3
    %p219 = por %p217, %p218
    %p220 = scmp.ne.s32.totalorder %s209, %s210
    %p221 = scmp.eq.s32.totalorder %s18, 0
    %p222 = por %p220, %p221
    %p223 = scmp.ne.s32.totalorder %s209, %s210
    %p224 = scmp.eq.s32.totalorder %s19, 3
    %p225 = por %p223, %p224
    %p227 = scmp.ne.s32.totalorder %s210, %s226
    %p228 = scmp.eq.s32.totalorder %s19, 0
    %p229 = por %p227, %p228
    %p230 = scmp.le.s32.totalorder 1, %s13
    %p231 = scmp.lt.s32.totalorder %s13, 5
    %p232 = pnand %p230, %p231
    %p233 = pneg %p232
    // Predicated region
    $region9: #{homo_feature_rgcn_forward.8} parent=5 // pred_check
      _
    $region10: #{homo_feature_rgcn_forward.8} parent=5 // pred_check_branch
      %235 = sbr.rel (%p232) target = $region12
    $region11: #{homo_feature_rgcn_forward.8} parent=5 // pred_region
      %s236 = ssub.s32 %s13, 1
      // Predicated region
      $region13: #{homo_feature_rgcn_forward.8} parent=11 // pred_check
        %p237 = pneg %p74
      $region14: #{homo_feature_rgcn_forward.8} parent=11 // pred_check_branch
        %239 = sbr.rel (%p237) target = $region16
      $region15: #{homo_feature_rgcn_forward.8} parent=11 // pred_region
        _
      $region16: #{homo_feature_rgcn_forward.8} parent=11 // pred_fallthru
        _
      // Predicated region
      $region17: #{homo_feature_rgcn_forward.8} parent=11 // pred_check
        %p240 = pneg %p100
      $region18: #{homo_feature_rgcn_forward.8} parent=11 // pred_check_branch
        %242 = sbr.rel (%p240) target = $region20
      $region19: #{homo_feature_rgcn_forward.8} parent=11 // pred_region
        %s243 = smul.u32 3, %s22
        %p244 = scmp.lt.s32.totalorder %s243, 2
        %s245 = scalar_select %p244, %s243, 2
        %s246 = smul.addr %s245, 4
        %s247 = scalar_lea.vmem %s2, %s246
        %s248 = smul.u32 3, %s22
      $region20: #{homo_feature_rgcn_forward.8} parent=11 // pred_fallthru
        _
      // Predicated region
      $region21: #{homo_feature_rgcn_forward.8} parent=11 // pred_check
        %p249 = pneg %p175
      $region22: #{homo_feature_rgcn_forward.8} parent=11 // pred_check_branch
        %251 = sbr.rel (%p249) target = $region24
      $region23: #{homo_feature_rgcn_forward.8} parent=11 // pred_region
        _
      $region24: #{homo_feature_rgcn_forward.8} parent=11 // pred_fallthru
        _
      // Predicated region
      $region25: #{homo_feature_rgcn_forward.8} parent=11 // pred_check
        %p252 = pneg %p196
      $region26: #{homo_feature_rgcn_forward.8} parent=11 // pred_check_branch
        %254 = sbr.rel (%p252) target = $region28
      $region27: #{homo_feature_rgcn_forward.8} parent=11 // pred_region
        _
      $region28: #{homo_feature_rgcn_forward.8} parent=11 // pred_fallthru
        _
    $region12: #{homo_feature_rgcn_forward.8} parent=5 // pred_fallthru
      _
    %p255 = scmp.lt.s32.totalorder %s13, 4
    // Predicated region
    $region29: #{homo_feature_rgcn_forward.8} parent=5 // pred_check
      %p256 = pneg %p255
    $region30: #{homo_feature_rgcn_forward.8} parent=5 // pred_check_branch
      %258 = sbr.rel (%p256) target = $region32
    $region31: #{homo_feature_rgcn_forward.8} parent=5 // pred_region
      // Predicated region
      $region33: #{homo_feature_rgcn_forward.8} parent=31 // pred_check
        %p259 = pneg %p47
      $region34: #{homo_feature_rgcn_forward.8} parent=31 // pred_check_branch
        %261 = sbr.rel (%p259) target = $region36
      $region35: #{homo_feature_rgcn_forward.8} parent=31 // pred_region
        %s262 = smul.u32 3, %s20
        %p263 = scmp.lt.s32.totalorder %s21, 3
        %s264 = scalar_select %p263, %s21, 3
        %p265 = scmp.lt.s32.totalorder %s262, 2
        %s266 = scalar_select %p265, %s262, 2
        %s267 = smul.addr %s264, 3
        %s268 = sadd.s32 %s266, %s267
        %s269 = smul.addr %s268, 4
        %s270 = scalar_lea.vmem %s0, %s269
        %s271 = smul.u32 3, %s20
      $region36: #{homo_feature_rgcn_forward.8} parent=31 // pred_fallthru
        _
      // Predicated region
      $region37: #{homo_feature_rgcn_forward.8} parent=31 // pred_check
        %p272 = pneg %p120
      $region38: #{homo_feature_rgcn_forward.8} parent=31 // pred_check_branch
        %274 = sbr.rel (%p272) target = $region40
      $region39: #{homo_feature_rgcn_forward.8} parent=31 // pred_region
        %p275 = scmp.lt.s32.totalorder %s21, 3
        %s276 = scalar_select %p275, %s21, 3
        %s277 = smul.addr %s276, 2
        %s278 = smul.addr %s277, 4
        %s279 = scalar_lea.vmem %s3, %s278
      $region40: #{homo_feature_rgcn_forward.8} parent=31 // pred_fallthru
        _
      // Predicated region
      $region41: #{homo_feature_rgcn_forward.8} parent=31 // pred_check
        %p280 = pneg %p148
      $region42: #{homo_feature_rgcn_forward.8} parent=31 // pred_check_branch
        %282 = sbr.rel (%p280) target = $region44
      $region43: #{homo_feature_rgcn_forward.8} parent=31 // pred_region
        %s283 = smul.u32 3, %s20
        %p284 = scmp.lt.s32.totalorder %s21, 3
        %s285 = scalar_select %p284, %s21, 3
        %p286 = scmp.lt.s32.totalorder %s283, 2
        %s287 = scalar_select %p286, %s283, 2
        %s288 = smul.addr %s285, 3
        %s289 = sadd.s32 %s287, %s288
        %s290 = smul.addr %s289, 8
        %s291 = scalar_lea.vmem %s4, %s290
        %s292 = smul.u32 3, %s20
      $region44: #{homo_feature_rgcn_forward.8} parent=31 // pred_fallthru
        _
    $region32: #{homo_feature_rgcn_forward.8} parent=5 // pred_fallthru
      _
    %p293 = scmp.le.s32.totalorder 1, %s13
    %p294 = scmp.lt.s32.totalorder %s13, 5
    %p295 = pnand %p293, %p294
    %p296 = pneg %p295
    // Predicated region
    $region45: #{homo_feature_rgcn_forward.8} parent=5 // pred_check
      _
    $region46: #{homo_feature_rgcn_forward.8} parent=5 // pred_check_branch
      %298 = sbr.rel (%p295) target = $region48
    $region47: #{homo_feature_rgcn_forward.8} parent=5 // pred_region
      %s299 = ssub.s32 %s13, 1
      %s300 = smul.u32 3, %s22
      %p301 = scmp.lt.s32.totalorder %s23, 3
      %s302 = scalar_select %p301, %s23, 3
      %p303 = scmp.lt.s32.totalorder %s300, 2
      %s304 = scalar_select %p303, %s300, 2
      %s305 = smul.addr %s302, 3
      %s306 = sadd.s32 %s304, %s305
      %s307 = smul.addr %s306, 4
      %s308 = scalar_lea.vmem %s0, %s307
      %p309 = pneg %p53
      %p310 = pneg %p50
      %p311 = pneg %p74
      %p312 = pneg %p71
      %s313 = smul.u32 3, %s22
      %p314 = scmp.lt.s32.totalorder %s313, 2
      %s315 = scalar_select %p314, %s313, 2
      %s316 = smul.addr %s315, 4
      %s317 = scalar_lea.vmem %s2, %s316
      %p318 = pneg %p100
      %p319 = pneg %p97
      %p320 = scmp.lt.s32.totalorder %s23, 3
      %s321 = scalar_select %p320, %s23, 3
      %s322 = smul.addr %s321, 2
      %s323 = smul.addr %s322, 4
      %s324 = scalar_lea.vmem %s3, %s323
      %p325 = pneg %p126
      %p326 = pneg %p123
      %s327 = smul.u32 3, %s22
      %p328 = scmp.lt.s32.totalorder %s23, 3
      %s329 = scalar_select %p328, %s23, 3
      %p330 = scmp.lt.s32.totalorder %s327, 2
      %s331 = scalar_select %p330, %s327, 2
      %s332 = smul.addr %s329, 3
      %s333 = sadd.s32 %s331, %s332
      %s334 = smul.addr %s333, 8
      %s335 = scalar_lea.vmem %s4, %s334
      %p336 = pneg %p154
      %p337 = pneg %p151
      %p338 = pneg %p175
      %p339 = pneg %p172
      %p340 = pneg %p196
      %p341 = pneg %p193
      %p342 = pneg %p222
      %p343 = pneg %p219
      %s344 = smul.u32 3, %s22
      %p345 = scmp.lt.s32.totalorder %s344, 2
      %s346 = scalar_select %p345, %s344, 2
      %s347 = smul.addr %s346, 8
      %s348 = scalar_lea.vmem %s7, %s347
      %s349 = smul.u32 3, %s22
      %p350 = scmp.lt.s32.totalorder %s23, 3
      %s351 = scalar_select %p350, %s23, 3
      %p352 = scmp.lt.s32.totalorder %s349, 2
      %s353 = scalar_select %p352, %s349, 2
      %s354 = smul.addr %s351, 3
      %s355 = sadd.s32 %s353, %s354
      %s356 = smul.addr %s355, 4
      %s357 = scalar_lea.vmem %s0, %s356
      %s358 = smul.u32 3, %s22
      %s359 = smul.u32 3, %s22
      %p360 = scmp.lt.s32.totalorder %s359, 2
      %s361 = scalar_select %p360, %s359, 2
      %s362 = smul.addr %s361, 4
      %s363 = scalar_lea.vmem %s2, %s362
      %s364 = smul.u32 3, %s22
      %p365 = scmp.lt.s32.totalorder %s23, 3
      %s366 = scalar_select %p365, %s23, 3
      %s367 = smul.addr %s366, 2
      %s368 = smul.addr %s367, 4
      %s369 = scalar_lea.vmem %s3, %s368
      %s370 = smul.u32 3, %s22
      %p371 = scmp.lt.s32.totalorder %s23, 3
      %s372 = scalar_select %p371, %s23, 3
      %p373 = scmp.lt.s32.totalorder %s370, 2
      %s374 = scalar_select %p373, %s370, 2
      %s375 = smul.addr %s372, 3
      %s376 = sadd.s32 %s374, %s375
      %s377 = smul.addr %s376, 8
      %s378 = scalar_lea.vmem %s4, %s377
      %s379 = smul.u32 3, %s22
      %s380 = smul.u32 3, %s22
      %p381 = scmp.lt.s32.totalorder %s380, 2
      %s382 = scalar_select %p381, %s380, 2
      %s383 = smul.addr %s382, 8
      %s384 = scalar_lea.vmem %s7, %s383
      %s385 = smul.u32 3, %s22
      %p387 = scmp.eq.s32.totalorder %s23, 0
      // Predicated region
      $region49: #{homo_feature_rgcn_forward.8} parent=47 // pred_check
        %p388 = pneg %p387
      $region50: #{homo_feature_rgcn_forward.8} parent=47 // pred_check_branch
        %390 = sbr.rel (%p388) target = $region52
      $region51: #{homo_feature_rgcn_forward.8} parent=47 // pred_region
        %v391 = vld [vmem:[%s363] sm:$0xf]
        %v392 = vld [vmem:[%s363 + $0x4] sm:$0xf]
        %v393 = vld [vmem:[%s363 + $0x8] sm:$0xf]
        %v394 = vld [vmem:[%s5] sm:$0xf]
        %v395 = vld [vmem:[%s5 + $0x4] sm:$0xf]
        %v396 = vld [vmem:[%s6] sm:$0x1]
        %v398 = vlaneseq
        %v399 = vshrl.u32 %v398, 7
        %v400 = vsub.s32 0, %v399
        %v401 = vrot.slane %v396, %v400
        %v406 = vunpack.c.l.b16 %v391
        %v407 = vunpack.c.l.b16 %v392
        %v408 = vunpack.c.l.b16 %v393
        %v409 = vpack.c.b16 %v407, %v406
        %v410 = vpack.c.b16 %v408, %v408
        %v413 = vunpack.c.l.b16 %v394
        %v414 = vunpack.c.l.b16 %v395
        %v415 = vpack.c.b16 %v414, %v413
        %vm417 = vcmask 130048
        %v419 = vsel %vm417, %v409, 0
        %v422 = vsel %vm417, %v410, 0
        %424 = vmatprep.subr.bf16.mxu0 0
        %425 = vmatpush1.bf16.msra.mxu0 %v415
        %426 = vmatprep.subr.bf16.mxu0 0
        %427 = vmatpush1.bf16.msra.mxu0 0
        %428 = vmatprep.subr.bf16.mxu0 0
        %429 = vmatpush1.bf16.msra.mxu0 0
        %430 = vmatprep.subr.bf16.mxu0 0
        %431 = vmatpush1.bf16.msra.mxu0 0
        %432 = vmatprep.subr.bf16.mxu0 0
        %433 = vmatpush1.bf16.msra.mxu0 0
        %434 = vmatprep.subr.bf16.mxu0 0
        %435 = vmatpush1.bf16.msra.mxu0 0
        %436 = vmatprep.subr.bf16.mxu0 0
        %437 = vmatpush1.bf16.msra.mxu0 0
        %438 = vmatprep.subr.bf16.mxu0 0
        %439 = vmatpush1.bf16.msra.mxu0 0
        %440 = vmatprep.subr.bf16.mxu0 0
        %441 = vmatpush1.bf16.msra.mxu0 0
        %442 = vmatprep.subr.bf16.mxu0 0
        %443 = vmatpush1.bf16.msra.mxu0 0
        %444 = vmatprep.subr.bf16.mxu0 0
        %445 = vmatpush1.bf16.msra.mxu0 0
        %446 = vmatprep.subr.bf16.mxu0 0
        %447 = vmatpush1.bf16.msra.mxu0 0
        %448 = vmatprep.subr.bf16.mxu0 0
        %449 = vmatpush1.bf16.msra.mxu0 0
        %450 = vmatprep.subr.bf16.mxu0 0
        %451 = vmatpush1.bf16.msra.mxu0 0
        %452 = vmatprep.subr.bf16.mxu0 0
        %453 = vmatpush1.bf16.msra.mxu0 0
        %454 = vmatprep.subr.bf16.mxu0 0
        %455 = vmatpush1.bf16.msra.mxu0 0
        %456 = vmatprep.mubr.bf16.mxu0 0
        %457 = vmatmul.mubr.bf16.gmra.mrb[0].mxu0 %v419
        %v458 = vpop.f32.mrb[0].mxu0
        %v459 = vadd.f32 %v401, %v458
        %v460 = vpop.f32.mrb[0].mxu0
        %v461 = vpop.f32.mrb[0].mxu0
        %v462 = vadd.f32 %v401, %v461
        %v463 = vpop.f32.mrb[0].mxu0
        %464 = vmatprep.mubr.bf16.mxu0 0
        %465 = vmatmul.mubr.bf16.gmra.mrb[0].mxu0 %v422
        %v466 = vpop.f32.mrb[0].mxu0
        %v467 = vadd.f32 %v401, %v466
        %v468 = vpop.f32.mrb[0].mxu0
        %v469 = vpop.f32.mrb[0].mxu0
        %v470 = vpop.f32.mrb[0].mxu0
        %471 = vdwg.mxu0
        %472 = vst [vmem:[%s384] sm:$0xff] %v459
        %473 = vst [vmem:[%s384 + $0x8] sm:$0xff] %v462
        %474 = vst [vmem:[%s384 + $0x10] sm:$0xff] %v467
      $region52: #{homo_feature_rgcn_forward.8} parent=47 // pred_fallthru
        _
      %v475 = vld [vmem:[%s357] sm:$0xf]
      %v476 = vld [vmem:[%s357 + $0x4] sm:$0xf]
      %v477 = vld [vmem:[%s357 + $0x8] sm:$0xf]
      %v478 = vld [vmem:[%s1] sm:$0xf]
      %v479 = vld [vmem:[%s1 + $0x4] sm:$0xf]
      %v480 = vld [vmem:[%s1 + $0x8] sm:$0xf]
      %v484 = vunpack.c.l.b16 %v475
      %v485 = vunpack.c.l.b16 %v476
      %v486 = vunpack.c.l.b16 %v477
      %v487 = vpack.c.b16 %v485, %v484
      %v488 = vpack.c.b16 %v486, %v486
      %v492 = vunpack.c.l.b16 %v478
      %v493 = vunpack.c.l.b16 %v479
      %v494 = vunpack.c.l.b16 %v480
      %v495 = vpack.c.b16 %v493, %v492
      %v496 = vpack.c.b16 %v494, %v494
      %vm498 = vcmask 195584
      %v500 = vsel %vm498, %v487, 0
      %v503 = vsel %vm498, %v488, 0
      %vm505 = vcmask 1043456
      %v507 = vsel %vm505, %v496, 0
      %509 = vmatprep.subr.bf16.mxu0 0
      %510 = vmatpush1.bf16.msra.mxu0 %v495
      %511 = vmatprep.subr.bf16.mxu0 0
      %512 = vmatpush1.bf16.msra.mxu0 %v507
      %513 = vmatprep.subr.bf16.mxu0 0
      %514 = vmatpush1.bf16.msra.mxu0 0
      %515 = vmatprep.subr.bf16.mxu0 0
      %516 = vmatpush1.bf16.msra.mxu0 0
      %517 = vmatprep.subr.bf16.mxu0 0
      %518 = vmatpush1.bf16.msra.mxu0 0
      %519 = vmatprep.subr.bf16.mxu0 0
      %520 = vmatpush1.bf16.msra.mxu0 0
      %521 = vmatprep.subr.bf16.mxu0 0
      %522 = vmatpush1.bf16.msra.mxu0 0
      %523 = vmatprep.subr.bf16.mxu0 0
      %524 = vmatpush1.bf16.msra.mxu0 0
      %525 = vmatprep.subr.bf16.mxu0 0
      %526 = vmatpush1.bf16.msra.mxu0 0
      %527 = vmatprep.subr.bf16.mxu0 0
      %528 = vmatpush1.bf16.msra.mxu0 0
      %529 = vmatprep.subr.bf16.mxu0 0
      %530 = vmatpush1.bf16.msra.mxu0 0
      %531 = vmatprep.subr.bf16.mxu0 0
      %532 = vmatpush1.bf16.msra.mxu0 0
      %533 = vmatprep.subr.bf16.mxu0 0
      %534 = vmatpush1.bf16.msra.mxu0 0
      %535 = vmatprep.subr.bf16.mxu0 0
      %536 = vmatpush1.bf16.msra.mxu0 0
      %537 = vmatprep.subr.bf16.mxu0 0
      %538 = vmatpush1.bf16.msra.mxu0 0
      %539 = vmatprep.subr.bf16.mxu0 0
      %540 = vmatpush1.bf16.msra.mxu0 0
      %541 = vmatprep.mubr.bf16.mxu0 0
      %542 = vmatmul.mubr.bf16.gmra.mrb[0].mxu0 %v500
      %v543 = vpop.f32.mrb[0].mxu0
      %v544 = vadd.f32 0.0, %v543
      %v545 = vpop.f32.mrb[0].mxu0
      %v546 = vpop.f32.mrb[0].mxu0
      %v547 = vadd.f32 0.0, %v546
      %v548 = vpop.f32.mrb[0].mxu0
      %549 = vmatprep.mubr.bf16.mxu0 0
      %550 = vmatmul.mubr.bf16.gmra.mrb[0].mxu0 %v503
      %v551 = vpop.f32.mrb[0].mxu0
      %v552 = vadd.f32 0.0, %v551
      %v553 = vpop.f32.mrb[0].mxu0
      %v554 = vpop.f32.mrb[0].mxu0
      %v555 = vpop.f32.mrb[0].mxu0
      %556 = vdwg.mxu0
      %v557 = vld [vmem:[%s378] sm:$0xff]
      %v558 = vld [vmem:[%s378 + $0x8] sm:$0xff]
      %v559 = vld [vmem:[%s378 + $0x10] sm:$0xff]
      %561 = vset.pattern.permute.xlu0 0
      %562 = vperm.xlu0 %561, %v557
      %v563 = vpop.permute.xlu0 %562
      %566 = vset.pattern.permute.xlu0 0
      %567 = vperm.xlu0 %566, %v558
      %v568 = vpop.permute.xlu0 %567
      %571 = vset.pattern.permute.xlu0 0
      %572 = vperm.xlu0 %571, %v559
      %v573 = vpop.permute.xlu0 %572
      %v575 = vmul.f32 %v544, %v563
      %v576 = vmul.f32 %v547, %v568
      %v577 = vmul.f32 %v552, %v573
      %v578 = vld [vmem:[%s384] sm:$0xff]
      %v579 = vld [vmem:[%s384 + $0x8] sm:$0xff]
      %v580 = vld [vmem:[%s384 + $0x10] sm:$0xff]
      %v581 = vpack.c.bf16 %v576, %v575
      %v582 = vpack.c.bf16 %v577, %v577
      %v583 = vld [vmem:[%s369] sm:$0xf]
      %v584 = vld [vmem:[%s369 + $0x4] sm:$0xf]
      %v587 = vunpack.c.l.b16 %v583
      %v588 = vunpack.c.l.b16 %v584
      %v589 = vpack.c.b16 %v588, %v587
      %vm591 = vcmask 130048
      %v593 = vsel %vm591, %v581, 0
      %v596 = vsel %vm591, %v582, 0
      %598 = vmatprep.subr.bf16.mxu0 0
      %599 = vmatpush1.bf16.msra.mxu0 %v589
      %600 = vmatprep.subr.bf16.mxu0 0
      %601 = vmatpush1.bf16.msra.mxu0 0
      %602 = vmatprep.subr.bf16.mxu0 0
      %603 = vmatpush1.bf16.msra.mxu0 0
      %604 = vmatprep.subr.bf16.mxu0 0
      %605 = vmatpush1.bf16.msra.mxu0 0
      %606 = vmatprep.subr.bf16.mxu0 0
      %607 = vmatpush1.bf16.msra.mxu0 0
      %608 = vmatprep.subr.bf16.mxu0 0
      %609 = vmatpush1.bf16.msra.mxu0 0
      %610 = vmatprep.subr.bf16.mxu0 0
      %611 = vmatpush1.bf16.msra.mxu0 0
      %612 = vmatprep.subr.bf16.mxu0 0
      %613 = vmatpush1.bf16.msra.mxu0 0
      %614 = vmatprep.subr.bf16.mxu0 0
      %615 = vmatpush1.bf16.msra.mxu0 0
      %616 = vmatprep.subr.bf16.mxu0 0
      %617 = vmatpush1.bf16.msra.mxu0 0
      %618 = vmatprep.subr.bf16.mxu0 0
      %619 = vmatpush1.bf16.msra.mxu0 0
      %620 = vmatprep.subr.bf16.mxu0 0
      %621 = vmatpush1.bf16.msra.mxu0 0
      %622 = vmatprep.subr.bf16.mxu0 0
      %623 = vmatpush1.bf16.msra.mxu0 0
      %624 = vmatprep.subr.bf16.mxu0 0
      %625 = vmatpush1.bf16.msra.mxu0 0
      %626 = vmatprep.subr.bf16.mxu0 0
      %627 = vmatpush1.bf16.msra.mxu0 0
      %628 = vmatprep.subr.bf16.mxu0 0
      %629 = vmatpush1.bf16.msra.mxu0 0
      %630 = vmatprep.mubr.bf16.mxu0 0
      %631 = vmatmul.mubr.bf16.gmra.mrb[0].mxu0 %v593
      %v632 = vpop.f32.mrb[0].mxu0
      %v633 = vadd.f32 0.0, %v632
      %v634 = vpop.f32.mrb[0].mxu0
      %v635 = vpop.f32.mrb[0].mxu0
      %v636 = vadd.f32 0.0, %v635
      %v637 = vpop.f32.mrb[0].mxu0
      %638 = vmatprep.mubr.bf16.mxu0 0
      %639 = vmatmul.mubr.bf16.gmra.mrb[0].mxu0 %v596
      %v640 = vpop.f32.mrb[0].mxu0
      %v641 = vadd.f32 0.0, %v640
      %v642 = vpop.f32.mrb[0].mxu0
      %v643 = vpop.f32.mrb[0].mxu0
      %v644 = vpop.f32.mrb[0].mxu0
      %645 = vdwg.mxu0
      %v646 = vadd.f32 %v578, %v633
      %v647 = vadd.f32 %v579, %v636
      %v648 = vadd.f32 %v580, %v641
      %649 = vst [vmem:[%s384] sm:$0xff] %v646
      %650 = vst [vmem:[%s384 + $0x8] sm:$0xff] %v647
      %651 = vst [vmem:[%s384 + $0x10] sm:$0xff] %v648
      %s652 = smul.u32 3, %s22
      %p653 = scmp.lt.s32.totalorder %s652, 2
      %s654 = scalar_select %p653, %s652, 2
      %s655 = smul.addr %s654, 8
      %s656 = scalar_lea.vmem %s7, %s655
      // Predicated region
      $region53: #{homo_feature_rgcn_forward.8} parent=47 // pred_check
        %p657 = pneg %p219
      $region54: #{homo_feature_rgcn_forward.8} parent=47 // pred_check_branch
        %659 = sbr.rel (%p657) target = $region56
      $region55: #{homo_feature_rgcn_forward.8} parent=47 // pred_region
        %s660 = smul.u32 3, %s22
      $region56: #{homo_feature_rgcn_forward.8} parent=47 // pred_fallthru
        _
      // Predicated region
      $region57: #{homo_feature_rgcn_forward.8} parent=47 // pred_check
        %p661 = pneg %p219
      $region58: #{homo_feature_rgcn_forward.8} parent=47 // pred_check_branch
        %663 = sbr.rel (%p661) target = $region60
      $region59: #{homo_feature_rgcn_forward.8} parent=47 // pred_region
        %s664 = smul.u32 3, %s22
        %p665 = scmp.lt.s32.totalorder %s664, 2
        %s666 = scalar_select %p665, %s664, 2
        %s667 = smul.addr %s666, 8
        %s668 = scalar_lea.vmem %s7, %s667
      $region60: #{homo_feature_rgcn_forward.8} parent=47 // pred_fallthru
        _
    $region48: #{homo_feature_rgcn_forward.8} parent=5 // pred_fallthru
      _
    %p669 = scmp.le.s32.totalorder 2, %s13
    // Predicated region
    $region61: #{homo_feature_rgcn_forward.8} parent=5 // pred_check
      %p670 = pneg %p669
    $region62: #{homo_feature_rgcn_forward.8} parent=5 // pred_check_branch
      %672 = sbr.rel (%p670) target = $region64
    $region63: #{homo_feature_rgcn_forward.8} parent=5 // pred_region
      %s673 = ssub.s32 %s13, 2
    $region64: #{homo_feature_rgcn_forward.8} parent=5 // pred_fallthru
      _
  $region6: #{homo_feature_rgcn_forward.8} parent=0 // loop_footer
    %s17 = sadd.s32 1, %s13
  $region7: #{homo_feature_rgcn_forward.8} parent=0 // loop_footer_branch
    %12 = sbr.rel target = $region3
  $region8: #{homo_feature_rgcn_forward.8} parent=0 // loop_exit
    _

</llo_original>
